<compile_context>
chip_gen: v7x
topology: tpu7x:2x2x1
jax: 0.10.0
libtpu: 0.0.40
codegen_flags: <defaults>
</compile_context>

<pallas_src>
import numpy as np
import jax
import jax.numpy as jnp
from jax.experimental import pallas as pl
from jax.experimental.pallas import tpu as pltpu


def _unpack_group_bf16(qw_ref, g, g8):
    """Unpack local quant group `g` of a packed weight block into raw nibbles.

    qw_ref: (C_block // 8, n_block) int32 packed block.
    Returns the (group_size, n_block) bf16 slab of raw (unscaled) nibbles.
    """
    qg = qw_ref[g * g8:(g + 1) * g8, :]                      # (G//8, nb) int32
    slabs = [(qg >> (4 * jn)) & 0xF for jn in range(8)]      # 8 x (G//8, nb)
    w = jnp.concatenate(slabs, axis=0)                       # (G, nb) int32
    # two-step cast keeps the Mosaic lowering simple (s32 -> f32 -> bf16)
    return w.astype(jnp.float32).astype(jnp.bfloat16)


def _make_kernel(K, tn, out_features, group_size, n_blocks):
    g8 = group_size // 8
    kg = K // group_size          # quant groups along K (gate/up contraction)
    ng = tn // group_size         # quant groups per N-block (down contraction)

    def kernel(x_ref,
               gqw_ref, gsc_ref, gzr_ref,
               uqw_ref, usc_ref, uzr_ref,
               dqw_ref, dsc_ref, dzr_ref,
               o_ref, acc_ref):
        j = pl.program_id(1)

        @pl.when(j == 0)
        def _init():
            acc_ref[...] = jnp.zeros_like(acc_ref)

        xv = x_ref[...]
        x = xv.astype(jnp.float32)          # f32 copy for per-group row-sums
        x_bf = xv.astype(jnp.bfloat16)      # bf16 MXU operand
        tm = xv.shape[0]

        # ---- gate & up projections for this tn-slice of the intermediate ----
        g_sc = gsc_ref[...]                                   # (kg, tn) f32
        u_sc = usc_ref[...]
        g_zs = gzr_ref[...].astype(jnp.float32) * g_sc        # z * s, precomputed
        u_zs = uzr_ref[...].astype(jnp.float32) * u_sc

        gate = jnp.zeros((tm, tn), jnp.float32)
        up = jnp.zeros((tm, tn), jnp.float32)
        for g in range(kg):                 # static unroll over quant groups
            sl = slice(g * group_size, (g + 1) * group_size)
            xg_bf = x_bf[:, sl]                               # shared x slice
            xs = jnp.sum(x[:, sl], axis=1, keepdims=True)     # (tm, 1)
            wg = _unpack_group_bf16(gqw_ref, g, g8)           # (G, tn) bf16
            wu = _unpack_group_bf16(uqw_ref, g, g8)
            pg = jnp.dot(xg_bf, wg, preferred_element_type=jnp.float32)
            pu = jnp.dot(xg_bf, wu, preferred_element_type=jnp.float32)
            gate = gate + pg * g_sc[g, :] - xs * g_zs[g, :]   # deferred zero/scale
            up = up + pu * u_sc[g, :] - xs * u_zs[g, :]

        h = gate * jax.nn.sigmoid(gate) * up                  # SiLU(gate) * up
        h_bf = h.astype(jnp.bfloat16)

        # ---- partial down projection: h_block @ W_down[j*tn:(j+1)*tn, :] ----
        d_sc = dsc_ref[0]                                     # (ng, O) f32
        d_zs = dzr_ref[0].astype(jnp.float32) * d_sc
        part = jnp.zeros((tm, out_features), jnp.float32)
        for g in range(ng):
            sl = slice(g * group_size, (g + 1) * group_size)
            hg_bf = h_bf[:, sl]
            hs = jnp.sum(h[:, sl], axis=1, keepdims=True)
            wd = _unpack_group_bf16(dqw_ref, g, g8)           # (G, O) bf16
            pd = jnp.dot(hg_bf, wd, preferred_element_type=jnp.float32)
            part = part + pd * d_sc[g, :] - hs * d_zs[g, :]

        acc_ref[...] += part

        @pl.when(j == n_blocks - 1)
        def _finalize():
            o_ref[...] = acc_ref[...].astype(o_ref.dtype)

    return kernel


def quant_llama_mlp(x, gate_w, up_w, down_w, *, group_size=128, tm=256, tn=256,
                    vmem_limit_bytes=48 * 1024 * 1024):
    """Fused quantized Llama MLP. gate_w/up_w/down_w = (qweight, scales, qzeros)."""
    *lead, K = x.shape
    x2d = x.reshape(-1, K)
    M = x2d.shape[0]

    g_qw, g_sc, g_zr = gate_w
    u_qw, u_sc, u_zr = up_w
    d_qw, d_sc, d_zr = down_w
    N = g_sc.shape[1]              # intermediate_size
    O = d_sc.shape[1]              # out_features

    assert group_size % 8 == 0
    assert K % group_size == 0, "in_features must be a multiple of group_size"
    tn = min(tn, N)
    assert N % tn == 0 and tn % group_size == 0, (N, tn, group_size)
    assert (tn // 8) % 8 == 0 or tn == N   # keep down-qweight blocks 8-row aligned

    # Row tile: large for prefill-sized M, clamped (8-aligned) for decode-sized M.
    tm = max(8, min(tm, ((M + 7) // 8) * 8))
    m_pad = ((M + tm - 1) // tm) * tm
    if m_pad != M:
        x2d = jnp.pad(x2d, ((0, m_pad - M), (0, 0)))

    n_m = m_pad // tm
    n_n = N // tn
    kg = K // group_size
    ng_blk = tn // group_size

    # Re-block the down-proj scales/zeros so each N-tile's quant groups sit at a
    # leading block index (no dynamic group indexing inside the kernel).
    d_sc_b = d_sc.reshape(n_n, ng_blk, O)
    d_zr_b = d_zr.reshape(n_n, ng_blk, O)

    in_specs = [
        pl.BlockSpec((tm, K), lambda i, j: (i, 0)),            # x rows (resident over j)
        pl.BlockSpec((K // 8, tn), lambda i, j: (0, j)),       # gate qweight
        pl.BlockSpec((kg, tn), lambda i, j: (0, j)),           # gate scales
        pl.BlockSpec((kg, tn), lambda i, j: (0, j)),           # gate qzeros
        pl.BlockSpec((K // 8, tn), lambda i, j: (0, j)),       # up qweight
        pl.BlockSpec((kg, tn), lambda i, j: (0, j)),           # up scales
        pl.BlockSpec((kg, tn), lambda i, j: (0, j)),           # up qzeros
        pl.BlockSpec((tn // 8, O), lambda i, j: (j, 0)),       # down qweight
        pl.BlockSpec((1, ng_blk, O), lambda i, j: (j, 0, 0)),  # down scales
        pl.BlockSpec((1, ng_blk, O), lambda i, j: (j, 0, 0)),  # down qzeros
    ]
    out_spec = pl.BlockSpec((tm, O), lambda i, j: (i, 0))

    # Advisory cost estimate for the surrounding XLA schedule.
    flops = int(2 * m_pad * (2 * K * N + N * O))
    weight_bytes = 4 * (g_qw.size + u_qw.size + d_qw.size
                        + 2 * (g_sc.size + u_sc.size + d_sc.size))
    bytes_accessed = int(x2d.size * x2d.dtype.itemsize
                         + n_m * weight_bytes
                         + m_pad * O * x2d.dtype.itemsize)
    cost = pl.CostEstimate(flops=flops, transcendentals=int(m_pad * N),
                           bytes_accessed=bytes_accessed)

    kernel = _make_kernel(K, tn, O, group_size, n_n)
    out2d = pl.pallas_call(
        kernel,
        out_shape=jax.ShapeDtypeStruct((m_pad, O), x.dtype),
        grid=(n_m, n_n),
        in_specs=in_specs,
        out_specs=out_spec,
        scratch_shapes=[pltpu.VMEM((tm, O), jnp.float32)],     # f32 down-proj accumulator
        compiler_params=pltpu.CompilerParams(
            dimension_semantics=("parallel", "arbitrary"),
            vmem_limit_bytes=vmem_limit_bytes),
        cost_estimate=cost,
    )(x2d, g_qw, g_sc, g_zr, u_qw, u_sc, u_zr, d_qw, d_sc_b, d_zr_b)

    if m_pad != M:
        out2d = out2d[:M]
    return out2d.reshape(*lead, O)


# ------------------- deterministic synthetic weights + reference -------------------

def pack_qweight(qvals_np, group_size):
    """Pack 4-bit values (C, Nout) into (C//8, Nout) int32, group-local slabs."""
    C, Nout = qvals_np.shape
    g8 = group_size // 8
    q = qvals_np.astype(np.uint32)
    packed = np.zeros((C // 8, Nout), dtype=np.uint32)
    for g in range(C // group_size):
        for jn in range(8):
            rows = q[g * group_size + jn * g8: g * group_size + (jn + 1) * g8, :]
            packed[g * g8:(g + 1) * g8, :] |= rows << np.uint32(4 * jn)
    return jnp.asarray(packed.view(np.int32))


def make_quant_weights(key, in_features, out_features, group_size, scale=0.02):
    kq, kz, ks = jax.random.split(key, 3)
    n_groups = in_features // group_size
    qvals = jax.random.randint(kq, (in_features, out_features), 0, 16, dtype=jnp.int32)
    zeros = jax.random.randint(kz, (n_groups, out_features), 0, 16, dtype=jnp.int32)
    scales = (jax.random.uniform(ks, (n_groups, out_features), dtype=jnp.float32)
              + 0.5) * scale
    qweight = pack_qweight(np.asarray(qvals), group_size)
    return (qweight, scales, zeros), (qvals, zeros, scales)


def dequant_ref(qvals, zeros, scales, group_size):
    z = np.repeat(np.asarray(zeros), group_size, axis=0).astype(np.float32)
    s = np.repeat(np.asarray(scales), group_size, axis=0).astype(np.float32)
    return (np.asarray(qvals).astype(np.float32) - z) * s


if __name__ == "__main__":
    B, S = 2, 4                      # batch, seq
    K, N, O = 256, 512, 256          # in_features, intermediate_size, out_features
    GROUP = 128                      # quantization group size

    key = jax.random.PRNGKey(0)
    kx, kgk, kuk, kdk = jax.random.split(key, 4)
    x = jax.random.normal(kx, (B, S, K), dtype=jnp.float32)

    gate_w, gate_raw = make_quant_weights(kgk, K, N, GROUP)
    up_w, up_raw = make_quant_weights(kuk, K, N, GROUP)
    down_w, down_raw = make_quant_weights(kdk, N, O, GROUP)

    out = quant_llama_mlp(x, gate_w, up_w, down_w, group_size=GROUP, tm=256, tn=256)
    out = jax.block_until_ready(out)

    # plain-NumPy reference of the module's forward semantics
    Wg = dequant_ref(*gate_raw, GROUP)
    Wu = dequant_ref(*up_raw, GROUP)
    Wd = dequant_ref(*down_raw, GROUP)
    x2 = np.asarray(x, dtype=np.float32).reshape(-1, K)
    g = x2 @ Wg
    u = x2 @ Wu
    h = (g / (1.0 + np.exp(-g))) * u
    ref = (h @ Wd).reshape(B, S, O)

    assert out.shape == (B, S, O), out.shape
    np.testing.assert_allclose(np.asarray(out), ref, rtol=3e-2, atol=4e-1)
    print("KERNEL_OK")
</pallas_src>

<mosaic_0001>
module attributes {stable_mosaic.version = 11 : i64} {
  func.func @kernel(%arg0: i32, %arg1: i32, %arg2: memref<8x256xf32, #tpu.memory_space<vmem>>, %arg3: memref<32x256xi32, #tpu.memory_space<vmem>>, %arg4: memref<2x256xf32, #tpu.memory_space<vmem>>, %arg5: memref<2x256xi32, #tpu.memory_space<vmem>>, %arg6: memref<32x256xi32, #tpu.memory_space<vmem>>, %arg7: memref<2x256xf32, #tpu.memory_space<vmem>>, %arg8: memref<2x256xi32, #tpu.memory_space<vmem>>, %arg9: memref<32x256xi32, #tpu.memory_space<vmem>>, %arg10: memref<1x2x256xf32, #tpu.memory_space<vmem>>, %arg11: memref<1x2x256xi32, #tpu.memory_space<vmem>>, %arg12: memref<8x256xf32, #tpu.memory_space<vmem>>, %arg13: memref<8x256xf32, #tpu.memory_space<vmem>>) attributes {dimension_semantics = [#tpu.dimension_semantics<parallel>, #tpu.dimension_semantics<arbitrary>], iteration_bounds = array<i64: 1, 2>, scalar_prefetch = 0 : i64, scratch_operands = 1 : i64, tpu.core_type = #tpu.core_type<tc>, window_params = [{transform_indices = @transform_0, window_bounds = array<i64: 8, 256>}, {transform_indices = @transform_1, window_bounds = array<i64: 32, 256>}, {transform_indices = @transform_2, window_bounds = array<i64: 2, 256>}, {transform_indices = @transform_3, window_bounds = array<i64: 2, 256>}, {transform_indices = @transform_4, window_bounds = array<i64: 32, 256>}, {transform_indices = @transform_5, window_bounds = array<i64: 2, 256>}, {transform_indices = @transform_6, window_bounds = array<i64: 2, 256>}, {transform_indices = @transform_7, window_bounds = array<i64: 32, 256>}, {transform_indices = @transform_8, window_bounds = array<i64: 1, 2, 256>}, {transform_indices = @transform_9, window_bounds = array<i64: 1, 2, 256>}, {transform_indices = @transform_10, window_bounds = array<i64: 8, 256>}]} {
    %c0_i32 = arith.constant 0 : i32
    %0 = arith.cmpi eq, %arg1, %c0_i32 : i32
    %1 = arith.extui %0 : i1 to i32
    %c0_i32_0 = arith.constant 0 : i32
    %2 = arith.cmpi ne, %1, %c0_i32_0 : i32
    scf.if %2 {
      %cst_133 = arith.constant 0.000000e+00 : f32
      %352 = vector.broadcast %cst_133 : f32 to vector<8x256xf32>
      %c0_134 = arith.constant 0 : index
      %c0_135 = arith.constant 0 : index
      %353 = vector.load %arg13[%c0_134, %c0_135] : memref<8x256xf32, #tpu.memory_space<vmem>>, vector<8x256xf32>
      tpu.vector_store %arg13[%c0_134, %c0_135], %352 {strides = array<i32>} : memref<8x256xf32, #tpu.memory_space<vmem>>, vector<8x256xf32>,
    } else {
    }
    %c0 = arith.constant 0 : index
    %c0_1 = arith.constant 0 : index
    %3 = vector.load %arg2[%c0, %c0_1] : memref<8x256xf32, #tpu.memory_space<vmem>>, vector<8x256xf32>
    %4 = arith.truncf %3 : vector<8x256xf32> to vector<8x256xbf16>
    %c0_2 = arith.constant 0 : index
    %c0_3 = arith.constant 0 : index
    %5 = vector.load %arg4[%c0_2, %c0_3] : memref<2x256xf32, #tpu.memory_space<vmem>>, vector<2x256xf32>
    %c0_4 = arith.constant 0 : index
    %c0_5 = arith.constant 0 : index
    %6 = vector.load %arg7[%c0_4, %c0_5] : memref<2x256xf32, #tpu.memory_space<vmem>>, vector<2x256xf32>
    %c0_6 = arith.constant 0 : index
    %c0_7 = arith.constant 0 : index
    %7 = vector.load %arg5[%c0_6, %c0_7] : memref<2x256xi32, #tpu.memory_space<vmem>>, vector<2x256xi32>
    %8 = arith.sitofp %7 : vector<2x256xi32> to vector<2x256xf32>
    %9 = arith.mulf %8, %5 : vector<2x256xf32>
    %c0_8 = arith.constant 0 : index
    %c0_9 = arith.constant 0 : index
    %10 = vector.load %arg8[%c0_8, %c0_9] : memref<2x256xi32, #tpu.memory_space<vmem>>, vector<2x256xi32>
    %11 = arith.sitofp %10 : vector<2x256xi32> to vector<2x256xf32>
    %12 = arith.mulf %11, %6 : vector<2x256xf32>
    %cst = arith.constant 0.000000e+00 : f32
    %13 = vector.broadcast %cst : f32 to vector<8x256xf32>
    %cst_10 = arith.constant 0.000000e+00 : f32
    %14 = vector.broadcast %cst_10 : f32 to vector<8x256xf32>
    %15 = vector.extract_strided_slice %4 {offsets = [0, 0], sizes = [8, 128], strides = [1, 1]} : vector<8x256xbf16> to vector<8x128xbf16>
    %16 = vector.extract_strided_slice %3 {offsets = [0, 0], sizes = [8, 128], strides = [1, 1]} : vector<8x256xf32> to vector<8x128xf32>
    %cst_11 = arith.constant dense<0.000000e+00> : vector<8xf32>
    %17 = vector.multi_reduction <add>, %16, %cst_11 [1] : vector<8x128xf32> to vector<8xf32>
    %18 = vector.shape_cast %17 : vector<8xf32> to vector<8x1xf32>
    %c0_12 = arith.constant 0 : index
    %c0_13 = arith.constant 0 : index
    %19 = vector.load %arg3[%c0_12, %c0_13] : memref<32x256xi32, #tpu.memory_space<vmem>>, vector<16x256xi32>
    %c0_i32_14 = arith.constant 0 : i32
    %20 = vector.broadcast %c0_i32_14 : i32 to vector<16x256xi32>
    %21 = arith.shrsi %19, %20 : vector<16x256xi32>
    %c15_i32 = arith.constant 15 : i32
    %22 = vector.broadcast %c15_i32 : i32 to vector<16x256xi32>
    %23 = arith.andi %21, %22 : vector<16x256xi32>
    %c4_i32 = arith.constant 4 : i32
    %24 = vector.broadcast %c4_i32 : i32 to vector<16x256xi32>
    %25 = arith.shrsi %19, %24 : vector<16x256xi32>
    %c15_i32_15 = arith.constant 15 : i32
    %26 = vector.broadcast %c15_i32_15 : i32 to vector<16x256xi32>
    %27 = arith.andi %25, %26 : vector<16x256xi32>
    %c8_i32 = arith.constant 8 : i32
    %28 = vector.broadcast %c8_i32 : i32 to vector<16x256xi32>
    %29 = arith.shrsi %19, %28 : vector<16x256xi32>
    %c15_i32_16 = arith.constant 15 : i32
    %30 = vector.broadcast %c15_i32_16 : i32 to vector<16x256xi32>
    %31 = arith.andi %29, %30 : vector<16x256xi32>
    %c12_i32 = arith.constant 12 : i32
    %32 = vector.broadcast %c12_i32 : i32 to vector<16x256xi32>
    %33 = arith.shrsi %19, %32 : vector<16x256xi32>
    %c15_i32_17 = arith.constant 15 : i32
    %34 = vector.broadcast %c15_i32_17 : i32 to vector<16x256xi32>
    %35 = arith.andi %33, %34 : vector<16x256xi32>
    %c16_i32 = arith.constant 16 : i32
    %36 = vector.broadcast %c16_i32 : i32 to vector<16x256xi32>
    %37 = arith.shrsi %19, %36 : vector<16x256xi32>
    %c15_i32_18 = arith.constant 15 : i32
    %38 = vector.broadcast %c15_i32_18 : i32 to vector<16x256xi32>
    %39 = arith.andi %37, %38 : vector<16x256xi32>
    %c20_i32 = arith.constant 20 : i32
    %40 = vector.broadcast %c20_i32 : i32 to vector<16x256xi32>
    %41 = arith.shrsi %19, %40 : vector<16x256xi32>
    %c15_i32_19 = arith.constant 15 : i32
    %42 = vector.broadcast %c15_i32_19 : i32 to vector<16x256xi32>
    %43 = arith.andi %41, %42 : vector<16x256xi32>
    %c24_i32 = arith.constant 24 : i32
    %44 = vector.broadcast %c24_i32 : i32 to vector<16x256xi32>
    %45 = arith.shrsi %19, %44 : vector<16x256xi32>
    %c15_i32_20 = arith.constant 15 : i32
    %46 = vector.broadcast %c15_i32_20 : i32 to vector<16x256xi32>
    %47 = arith.andi %45, %46 : vector<16x256xi32>
    %c28_i32 = arith.constant 28 : i32
    %48 = vector.broadcast %c28_i32 : i32 to vector<16x256xi32>
    %49 = arith.shrsi %19, %48 : vector<16x256xi32>
    %c15_i32_21 = arith.constant 15 : i32
    %50 = vector.broadcast %c15_i32_21 : i32 to vector<16x256xi32>
    %51 = arith.andi %49, %50 : vector<16x256xi32>
    %52 = tpu.concatenate %23, %27, %31, %35, %39, %43, %47, %51 in 0 : vector<16x256xi32>, vector<16x256xi32>, vector<16x256xi32>, vector<16x256xi32>, vector<16x256xi32>, vector<16x256xi32>, vector<16x256xi32>, vector<16x256xi32> -> vector<128x256xi32>
    %53 = arith.sitofp %52 : vector<128x256xi32> to vector<128x256xf32>
    %54 = arith.truncf %53 : vector<128x256xf32> to vector<128x256xbf16>
    %c0_22 = arith.constant 0 : index
    %c0_23 = arith.constant 0 : index
    %55 = vector.load %arg6[%c0_22, %c0_23] : memref<32x256xi32, #tpu.memory_space<vmem>>, vector<16x256xi32>
    %c0_i32_24 = arith.constant 0 : i32
    %56 = vector.broadcast %c0_i32_24 : i32 to vector<16x256xi32>
    %57 = arith.shrsi %55, %56 : vector<16x256xi32>
    %c15_i32_25 = arith.constant 15 : i32
    %58 = vector.broadcast %c15_i32_25 : i32 to vector<16x256xi32>
    %59 = arith.andi %57, %58 : vector<16x256xi32>
    %c4_i32_26 = arith.constant 4 : i32
    %60 = vector.broadcast %c4_i32_26 : i32 to vector<16x256xi32>
    %61 = arith.shrsi %55, %60 : vector<16x256xi32>
    %c15_i32_27 = arith.constant 15 : i32
    %62 = vector.broadcast %c15_i32_27 : i32 to vector<16x256xi32>
    %63 = arith.andi %61, %62 : vector<16x256xi32>
    %c8_i32_28 = arith.constant 8 : i32
    %64 = vector.broadcast %c8_i32_28 : i32 to vector<16x256xi32>
    %65 = arith.shrsi %55, %64 : vector<16x256xi32>
    %c15_i32_29 = arith.constant 15 : i32
    %66 = vector.broadcast %c15_i32_29 : i32 to vector<16x256xi32>
    %67 = arith.andi %65, %66 : vector<16x256xi32>
    %c12_i32_30 = arith.constant 12 : i32
    %68 = vector.broadcast %c12_i32_30 : i32 to vector<16x256xi32>
    %69 = arith.shrsi %55, %68 : vector<16x256xi32>
    %c15_i32_31 = arith.constant 15 : i32
    %70 = vector.broadcast %c15_i32_31 : i32 to vector<16x256xi32>
    %71 = arith.andi %69, %70 : vector<16x256xi32>
    %c16_i32_32 = arith.constant 16 : i32
    %72 = vector.broadcast %c16_i32_32 : i32 to vector<16x256xi32>
    %73 = arith.shrsi %55, %72 : vector<16x256xi32>
    %c15_i32_33 = arith.constant 15 : i32
    %74 = vector.broadcast %c15_i32_33 : i32 to vector<16x256xi32>
    %75 = arith.andi %73, %74 : vector<16x256xi32>
    %c20_i32_34 = arith.constant 20 : i32
    %76 = vector.broadcast %c20_i32_34 : i32 to vector<16x256xi32>
    %77 = arith.shrsi %55, %76 : vector<16x256xi32>
    %c15_i32_35 = arith.constant 15 : i32
    %78 = vector.broadcast %c15_i32_35 : i32 to vector<16x256xi32>
    %79 = arith.andi %77, %78 : vector<16x256xi32>
    %c24_i32_36 = arith.constant 24 : i32
    %80 = vector.broadcast %c24_i32_36 : i32 to vector<16x256xi32>
    %81 = arith.shrsi %55, %80 : vector<16x256xi32>
    %c15_i32_37 = arith.constant 15 : i32
    %82 = vector.broadcast %c15_i32_37 : i32 to vector<16x256xi32>
    %83 = arith.andi %81, %82 : vector<16x256xi32>
    %c28_i32_38 = arith.constant 28 : i32
    %84 = vector.broadcast %c28_i32_38 : i32 to vector<16x256xi32>
    %85 = arith.shrsi %55, %84 : vector<16x256xi32>
    %c15_i32_39 = arith.constant 15 : i32
    %86 = vector.broadcast %c15_i32_39 : i32 to vector<16x256xi32>
    %87 = arith.andi %85, %86 : vector<16x256xi32>
    %88 = tpu.concatenate %59, %63, %67, %71, %75, %79, %83, %87 in 0 : vector<16x256xi32>, vector<16x256xi32>, vector<16x256xi32>, vector<16x256xi32>, vector<16x256xi32>, vector<16x256xi32>, vector<16x256xi32>, vector<16x256xi32> -> vector<128x256xi32>
    %89 = arith.sitofp %88 : vector<128x256xi32> to vector<128x256xf32>
    %90 = arith.truncf %89 : vector<128x256xf32> to vector<128x256xbf16>
    %cst_40 = arith.constant dense<0.000000e+00> : vector<8x256xf32>
    %91 = tpu.matmul %15, %54, %cst_40 {dimension_numbers = #tpu.dot_dimension_numbers<[1], [0], [0], [1], [0, 0, 1, 1], [], []>} : vector<8x128xbf16>, vector<128x256xbf16>, vector<8x256xf32> -> vector<8x256xf32>
    %cst_41 = arith.constant dense<0.000000e+00> : vector<8x256xf32>
    %92 = tpu.matmul %15, %90, %cst_41 {dimension_numbers = #tpu.dot_dimension_numbers<[1], [0], [0], [1], [0, 0, 1, 1], [], []>} : vector<8x128xbf16>, vector<128x256xbf16>, vector<8x256xf32> -> vector<8x256xf32>
    %93 = vector.extract_strided_slice %5 {offsets = [0, 0], sizes = [1, 256], strides = [1, 1]} : vector<2x256xf32> to vector<1x256xf32>
    %94 = vector.shape_cast %93 : vector<1x256xf32> to vector<256xf32>
    %95 = vector.shape_cast %94 : vector<256xf32> to vector<1x256xf32>
    %96 = vector.broadcast %95 : vector<1x256xf32> to vector<8x256xf32>
    %97 = arith.mulf %91, %96 : vector<8x256xf32>
    %98 = arith.addf %13, %97 : vector<8x256xf32>
    %99 = vector.extract_strided_slice %9 {offsets = [0, 0], sizes = [1, 256], strides = [1, 1]} : vector<2x256xf32> to vector<1x256xf32>
    %100 = vector.shape_cast %99 : vector<1x256xf32> to vector<256xf32>
    %101 = vector.shape_cast %100 : vector<256xf32> to vector<1x256xf32>
    %102 = vector.broadcast %18 : vector<8x1xf32> to vector<8x256xf32>
    %103 = vector.broadcast %101 : vector<1x256xf32> to vector<8x256xf32>
    %104 = arith.mulf %102, %103 : vector<8x256xf32>
    %105 = arith.subf %98, %104 : vector<8x256xf32>
    %106 = vector.extract_strided_slice %6 {offsets = [0, 0], sizes = [1, 256], strides = [1, 1]} : vector<2x256xf32> to vector<1x256xf32>
    %107 = vector.shape_cast %106 : vector<1x256xf32> to vector<256xf32>
    %108 = vector.shape_cast %107 : vector<256xf32> to vector<1x256xf32>
    %109 = vector.broadcast %108 : vector<1x256xf32> to vector<8x256xf32>
    %110 = arith.mulf %92, %109 : vector<8x256xf32>
    %111 = arith.addf %14, %110 : vector<8x256xf32>
    %112 = vector.extract_strided_slice %12 {offsets = [0, 0], sizes = [1, 256], strides = [1, 1]} : vector<2x256xf32> to vector<1x256xf32>
    %113 = vector.shape_cast %112 : vector<1x256xf32> to vector<256xf32>
    %114 = vector.shape_cast %113 : vector<256xf32> to vector<1x256xf32>
    %115 = vector.broadcast %18 : vector<8x1xf32> to vector<8x256xf32>
    %116 = vector.broadcast %114 : vector<1x256xf32> to vector<8x256xf32>
    %117 = arith.mulf %115, %116 : vector<8x256xf32>
    %118 = arith.subf %111, %117 : vector<8x256xf32>
    %119 = vector.extract_strided_slice %4 {offsets = [0, 128], sizes = [8, 128], strides = [1, 1]} : vector<8x256xbf16> to vector<8x128xbf16>
    %120 = vector.extract_strided_slice %3 {offsets = [0, 128], sizes = [8, 128], strides = [1, 1]} : vector<8x256xf32> to vector<8x128xf32>
    %cst_42 = arith.constant dense<0.000000e+00> : vector<8xf32>
    %121 = vector.multi_reduction <add>, %120, %cst_42 [1] : vector<8x128xf32> to vector<8xf32>
    %122 = vector.shape_cast %121 : vector<8xf32> to vector<8x1xf32>
    %c16 = arith.constant 16 : index
    %c0_43 = arith.constant 0 : index
    %123 = vector.load %arg3[%c16, %c0_43] : memref<32x256xi32, #tpu.memory_space<vmem>>, vector<16x256xi32>
    %c0_i32_44 = arith.constant 0 : i32
    %124 = vector.broadcast %c0_i32_44 : i32 to vector<16x256xi32>
    %125 = arith.shrsi %123, %124 : vector<16x256xi32>
    %c15_i32_45 = arith.constant 15 : i32
    %126 = vector.broadcast %c15_i32_45 : i32 to vector<16x256xi32>
    %127 = arith.andi %125, %126 : vector<16x256xi32>
    %c4_i32_46 = arith.constant 4 : i32
    %128 = vector.broadcast %c4_i32_46 : i32 to vector<16x256xi32>
    %129 = arith.shrsi %123, %128 : vector<16x256xi32>
    %c15_i32_47 = arith.constant 15 : i32
    %130 = vector.broadcast %c15_i32_47 : i32 to vector<16x256xi32>
    %131 = arith.andi %129, %130 : vector<16x256xi32>
    %c8_i32_48 = arith.constant 8 : i32
    %132 = vector.broadcast %c8_i32_48 : i32 to vector<16x256xi32>
    %133 = arith.shrsi %123, %132 : vector<16x256xi32>
    %c15_i32_49 = arith.constant 15 : i32
    %134 = vector.broadcast %c15_i32_49 : i32 to vector<16x256xi32>
    %135 = arith.andi %133, %134 : vector<16x256xi32>
    %c12_i32_50 = arith.constant 12 : i32
    %136 = vector.broadcast %c12_i32_50 : i32 to vector<16x256xi32>
    %137 = arith.shrsi %123, %136 : vector<16x256xi32>
    %c15_i32_51 = arith.constant 15 : i32
    %138 = vector.broadcast %c15_i32_51 : i32 to vector<16x256xi32>
    %139 = arith.andi %137, %138 : vector<16x256xi32>
    %c16_i32_52 = arith.constant 16 : i32
    %140 = vector.broadcast %c16_i32_52 : i32 to vector<16x256xi32>
    %141 = arith.shrsi %123, %140 : vector<16x256xi32>
    %c15_i32_53 = arith.constant 15 : i32
    %142 = vector.broadcast %c15_i32_53 : i32 to vector<16x256xi32>
    %143 = arith.andi %141, %142 : vector<16x256xi32>
    %c20_i32_54 = arith.constant 20 : i32
    %144 = vector.broadcast %c20_i32_54 : i32 to vector<16x256xi32>
    %145 = arith.shrsi %123, %144 : vector<16x256xi32>
    %c15_i32_55 = arith.constant 15 : i32
    %146 = vector.broadcast %c15_i32_55 : i32 to vector<16x256xi32>
    %147 = arith.andi %145, %146 : vector<16x256xi32>
    %c24_i32_56 = arith.constant 24 : i32
    %148 = vector.broadcast %c24_i32_56 : i32 to vector<16x256xi32>
    %149 = arith.shrsi %123, %148 : vector<16x256xi32>
    %c15_i32_57 = arith.constant 15 : i32
    %150 = vector.broadcast %c15_i32_57 : i32 to vector<16x256xi32>
    %151 = arith.andi %149, %150 : vector<16x256xi32>
    %c28_i32_58 = arith.constant 28 : i32
    %152 = vector.broadcast %c28_i32_58 : i32 to vector<16x256xi32>
    %153 = arith.shrsi %123, %152 : vector<16x256xi32>
    %c15_i32_59 = arith.constant 15 : i32
    %154 = vector.broadcast %c15_i32_59 : i32 to vector<16x256xi32>
    %155 = arith.andi %153, %154 : vector<16x256xi32>
    %156 = tpu.concatenate %127, %131, %135, %139, %143, %147, %151, %155 in 0 : vector<16x256xi32>, vector<16x256xi32>, vector<16x256xi32>, vector<16x256xi32>, vector<16x256xi32>, vector<16x256xi32>, vector<16x256xi32>, vector<16x256xi32> -> vector<128x256xi32>
    %157 = arith.sitofp %156 : vector<128x256xi32> to vector<128x256xf32>
    %158 = arith.truncf %157 : vector<128x256xf32> to vector<128x256xbf16>
    %c16_60 = arith.constant 16 : index
    %c0_61 = arith.constant 0 : index
    %159 = vector.load %arg6[%c16_60, %c0_61] : memref<32x256xi32, #tpu.memory_space<vmem>>, vector<16x256xi32>
    %c0_i32_62 = arith.constant 0 : i32
    %160 = vector.broadcast %c0_i32_62 : i32 to vector<16x256xi32>
    %161 = arith.shrsi %159, %160 : vector<16x256xi32>
    %c15_i32_63 = arith.constant 15 : i32
    %162 = vector.broadcast %c15_i32_63 : i32 to vector<16x256xi32>
    %163 = arith.andi %161, %162 : vector<16x256xi32>
    %c4_i32_64 = arith.constant 4 : i32
    %164 = vector.broadcast %c4_i32_64 : i32 to vector<16x256xi32>
    %165 = arith.shrsi %159, %164 : vector<16x256xi32>
    %c15_i32_65 = arith.constant 15 : i32
    %166 = vector.broadcast %c15_i32_65 : i32 to vector<16x256xi32>
    %167 = arith.andi %165, %166 : vector<16x256xi32>
    %c8_i32_66 = arith.constant 8 : i32
    %168 = vector.broadcast %c8_i32_66 : i32 to vector<16x256xi32>
    %169 = arith.shrsi %159, %168 : vector<16x256xi32>
    %c15_i32_67 = arith.constant 15 : i32
    %170 = vector.broadcast %c15_i32_67 : i32 to vector<16x256xi32>
    %171 = arith.andi %169, %170 : vector<16x256xi32>
    %c12_i32_68 = arith.constant 12 : i32
    %172 = vector.broadcast %c12_i32_68 : i32 to vector<16x256xi32>
    %173 = arith.shrsi %159, %172 : vector<16x256xi32>
    %c15_i32_69 = arith.constant 15 : i32
    %174 = vector.broadcast %c15_i32_69 : i32 to vector<16x256xi32>
    %175 = arith.andi %173, %174 : vector<16x256xi32>
    %c16_i32_70 = arith.constant 16 : i32
    %176 = vector.broadcast %c16_i32_70 : i32 to vector<16x256xi32>
    %177 = arith.shrsi %159, %176 : vector<16x256xi32>
    %c15_i32_71 = arith.constant 15 : i32
    %178 = vector.broadcast %c15_i32_71 : i32 to vector<16x256xi32>
    %179 = arith.andi %177, %178 : vector<16x256xi32>
    %c20_i32_72 = arith.constant 20 : i32
    %180 = vector.broadcast %c20_i32_72 : i32 to vector<16x256xi32>
    %181 = arith.shrsi %159, %180 : vector<16x256xi32>
    %c15_i32_73 = arith.constant 15 : i32
    %182 = vector.broadcast %c15_i32_73 : i32 to vector<16x256xi32>
    %183 = arith.andi %181, %182 : vector<16x256xi32>
    %c24_i32_74 = arith.constant 24 : i32
    %184 = vector.broadcast %c24_i32_74 : i32 to vector<16x256xi32>
    %185 = arith.shrsi %159, %184 : vector<16x256xi32>
    %c15_i32_75 = arith.constant 15 : i32
    %186 = vector.broadcast %c15_i32_75 : i32 to vector<16x256xi32>
    %187 = arith.andi %185, %186 : vector<16x256xi32>
    %c28_i32_76 = arith.constant 28 : i32
    %188 = vector.broadcast %c28_i32_76 : i32 to vector<16x256xi32>
    %189 = arith.shrsi %159, %188 : vector<16x256xi32>
    %c15_i32_77 = arith.constant 15 : i32
    %190 = vector.broadcast %c15_i32_77 : i32 to vector<16x256xi32>
    %191 = arith.andi %189, %190 : vector<16x256xi32>
    %192 = tpu.concatenate %163, %167, %171, %175, %179, %183, %187, %191 in 0 : vector<16x256xi32>, vector<16x256xi32>, vector<16x256xi32>, vector<16x256xi32>, vector<16x256xi32>, vector<16x256xi32>, vector<16x256xi32>, vector<16x256xi32> -> vector<128x256xi32>
    %193 = arith.sitofp %192 : vector<128x256xi32> to vector<128x256xf32>
    %194 = arith.truncf %193 : vector<128x256xf32> to vector<128x256xbf16>
    %cst_78 = arith.constant dense<0.000000e+00> : vector<8x256xf32>
    %195 = tpu.matmul %119, %158, %cst_78 {dimension_numbers = #tpu.dot_dimension_numbers<[1], [0], [0], [1], [0, 0, 1, 1], [], []>} : vector<8x128xbf16>, vector<128x256xbf16>, vector<8x256xf32> -> vector<8x256xf32>
    %cst_79 = arith.constant dense<0.000000e+00> : vector<8x256xf32>
    %196 = tpu.matmul %119, %194, %cst_79 {dimension_numbers = #tpu.dot_dimension_numbers<[1], [0], [0], [1], [0, 0, 1, 1], [], []>} : vector<8x128xbf16>, vector<128x256xbf16>, vector<8x256xf32> -> vector<8x256xf32>
    %197 = vector.extract_strided_slice %5 {offsets = [1, 0], sizes = [1, 256], strides = [1, 1]} : vector<2x256xf32> to vector<1x256xf32>
    %198 = vector.shape_cast %197 : vector<1x256xf32> to vector<256xf32>
    %199 = vector.shape_cast %198 : vector<256xf32> to vector<1x256xf32>
    %200 = vector.broadcast %199 : vector<1x256xf32> to vector<8x256xf32>
    %201 = arith.mulf %195, %200 : vector<8x256xf32>
    %202 = arith.addf %105, %201 : vector<8x256xf32>
    %203 = vector.extract_strided_slice %9 {offsets = [1, 0], sizes = [1, 256], strides = [1, 1]} : vector<2x256xf32> to vector<1x256xf32>
    %204 = vector.shape_cast %203 : vector<1x256xf32> to vector<256xf32>
    %205 = vector.shape_cast %204 : vector<256xf32> to vector<1x256xf32>
    %206 = vector.broadcast %122 : vector<8x1xf32> to vector<8x256xf32>
    %207 = vector.broadcast %205 : vector<1x256xf32> to vector<8x256xf32>
    %208 = arith.mulf %206, %207 : vector<8x256xf32>
    %209 = arith.subf %202, %208 : vector<8x256xf32>
    %210 = vector.extract_strided_slice %6 {offsets = [1, 0], sizes = [1, 256], strides = [1, 1]} : vector<2x256xf32> to vector<1x256xf32>
    %211 = vector.shape_cast %210 : vector<1x256xf32> to vector<256xf32>
    %212 = vector.shape_cast %211 : vector<256xf32> to vector<1x256xf32>
    %213 = vector.broadcast %212 : vector<1x256xf32> to vector<8x256xf32>
    %214 = arith.mulf %196, %213 : vector<8x256xf32>
    %215 = arith.addf %118, %214 : vector<8x256xf32>
    %216 = vector.extract_strided_slice %12 {offsets = [1, 0], sizes = [1, 256], strides = [1, 1]} : vector<2x256xf32> to vector<1x256xf32>
    %217 = vector.shape_cast %216 : vector<1x256xf32> to vector<256xf32>
    %218 = vector.shape_cast %217 : vector<256xf32> to vector<1x256xf32>
    %219 = vector.broadcast %122 : vector<8x1xf32> to vector<8x256xf32>
    %220 = vector.broadcast %218 : vector<1x256xf32> to vector<8x256xf32>
    %221 = arith.mulf %219, %220 : vector<8x256xf32>
    %222 = arith.subf %215, %221 : vector<8x256xf32>
    %223 = arith.negf %209 : vector<8x256xf32>
    %224 = math.exp %223 : vector<8x256xf32>
    %cst_80 = arith.constant 1.000000e+00 : f32
    %225 = vector.broadcast %cst_80 : f32 to vector<8x256xf32>
    %226 = arith.addf %225, %224 : vector<8x256xf32>
    %227 = arith.divf %225, %226 : vector<8x256xf32>
    %228 = arith.mulf %209, %227 : vector<8x256xf32>
    %229 = arith.mulf %228, %222 : vector<8x256xf32>
    %230 = arith.truncf %229 : vector<8x256xf32> to vector<8x256xbf16>
    %c0_81 = arith.constant 0 : index
    %c0_82 = arith.constant 0 : index
    %c0_83 = arith.constant 0 : index
    %231 = vector.load %arg10[%c0_81, %c0_82, %c0_83] : memref<1x2x256xf32, #tpu.memory_space<vmem>>, vector<1x2x256xf32>
    %232 = vector.shape_cast %231 : vector<1x2x256xf32> to vector<2x256xf32>
    %c0_84 = arith.constant 0 : index
    %c0_85 = arith.constant 0 : index
    %c0_86 = arith.constant 0 : index
    %233 = vector.load %arg11[%c0_84, %c0_85, %c0_86] : memref<1x2x256xi32, #tpu.memory_space<vmem>>, vector<1x2x256xi32>
    %234 = vector.shape_cast %233 : vector<1x2x256xi32> to vector<2x256xi32>
    %235 = arith.sitofp %234 : vector<2x256xi32> to vector<2x256xf32>
    %236 = arith.mulf %235, %232 : vector<2x256xf32>
    %cst_87 = arith.constant 0.000000e+00 : f32
    %237 = vector.broadcast %cst_87 : f32 to vector<8x256xf32>
    %238 = vector.extract_strided_slice %230 {offsets = [0, 0], sizes = [8, 128], strides = [1, 1]} : vector<8x256xbf16> to vector<8x128xbf16>
    %239 = vector.extract_strided_slice %229 {offsets = [0, 0], sizes = [8, 128], strides = [1, 1]} : vector<8x256xf32> to vector<8x128xf32>
    %cst_88 = arith.constant dense<0.000000e+00> : vector<8xf32>
    %240 = vector.multi_reduction <add>, %239, %cst_88 [1] : vector<8x128xf32> to vector<8xf32>
    %241 = vector.shape_cast %240 : vector<8xf32> to vector<8x1xf32>
    %c0_89 = arith.constant 0 : index
    %c0_90 = arith.constant 0 : index
    %242 = vector.load %arg9[%c0_89, %c0_90] : memref<32x256xi32, #tpu.memory_space<vmem>>, vector<16x256xi32>
    %c0_i32_91 = arith.constant 0 : i32
    %243 = vector.broadcast %c0_i32_91 : i32 to vector<16x256xi32>
    %244 = arith.shrsi %242, %243 : vector<16x256xi32>
    %c15_i32_92 = arith.constant 15 : i32
    %245 = vector.broadcast %c15_i32_92 : i32 to vector<16x256xi32>
    %246 = arith.andi %244, %245 : vector<16x256xi32>
    %c4_i32_93 = arith.constant 4 : i32
    %247 = vector.broadcast %c4_i32_93 : i32 to vector<16x256xi32>
    %248 = arith.shrsi %242, %247 : vector<16x256xi32>
    %c15_i32_94 = arith.constant 15 : i32
    %249 = vector.broadcast %c15_i32_94 : i32 to vector<16x256xi32>
    %250 = arith.andi %248, %249 : vector<16x256xi32>
    %c8_i32_95 = arith.constant 8 : i32
    %251 = vector.broadcast %c8_i32_95 : i32 to vector<16x256xi32>
    %252 = arith.shrsi %242, %251 : vector<16x256xi32>
    %c15_i32_96 = arith.constant 15 : i32
    %253 = vector.broadcast %c15_i32_96 : i32 to vector<16x256xi32>
    %254 = arith.andi %252, %253 : vector<16x256xi32>
    %c12_i32_97 = arith.constant 12 : i32
    %255 = vector.broadcast %c12_i32_97 : i32 to vector<16x256xi32>
    %256 = arith.shrsi %242, %255 : vector<16x256xi32>
    %c15_i32_98 = arith.constant 15 : i32
    %257 = vector.broadcast %c15_i32_98 : i32 to vector<16x256xi32>
    %258 = arith.andi %256, %257 : vector<16x256xi32>
    %c16_i32_99 = arith.constant 16 : i32
    %259 = vector.broadcast %c16_i32_99 : i32 to vector<16x256xi32>
    %260 = arith.shrsi %242, %259 : vector<16x256xi32>
    %c15_i32_100 = arith.constant 15 : i32
    %261 = vector.broadcast %c15_i32_100 : i32 to vector<16x256xi32>
    %262 = arith.andi %260, %261 : vector<16x256xi32>
    %c20_i32_101 = arith.constant 20 : i32
    %263 = vector.broadcast %c20_i32_101 : i32 to vector<16x256xi32>
    %264 = arith.shrsi %242, %263 : vector<16x256xi32>
    %c15_i32_102 = arith.constant 15 : i32
    %265 = vector.broadcast %c15_i32_102 : i32 to vector<16x256xi32>
    %266 = arith.andi %264, %265 : vector<16x256xi32>
    %c24_i32_103 = arith.constant 24 : i32
    %267 = vector.broadcast %c24_i32_103 : i32 to vector<16x256xi32>
    %268 = arith.shrsi %242, %267 : vector<16x256xi32>
    %c15_i32_104 = arith.constant 15 : i32
    %269 = vector.broadcast %c15_i32_104 : i32 to vector<16x256xi32>
    %270 = arith.andi %268, %269 : vector<16x256xi32>
    %c28_i32_105 = arith.constant 28 : i32
    %271 = vector.broadcast %c28_i32_105 : i32 to vector<16x256xi32>
    %272 = arith.shrsi %242, %271 : vector<16x256xi32>
    %c15_i32_106 = arith.constant 15 : i32
    %273 = vector.broadcast %c15_i32_106 : i32 to vector<16x256xi32>
    %274 = arith.andi %272, %273 : vector<16x256xi32>
    %275 = tpu.concatenate %246, %250, %254, %258, %262, %266, %270, %274 in 0 : vector<16x256xi32>, vector<16x256xi32>, vector<16x256xi32>, vector<16x256xi32>, vector<16x256xi32>, vector<16x256xi32>, vector<16x256xi32>, vector<16x256xi32> -> vector<128x256xi32>
    %276 = arith.sitofp %275 : vector<128x256xi32> to vector<128x256xf32>
    %277 = arith.truncf %276 : vector<128x256xf32> to vector<128x256xbf16>
    %cst_107 = arith.constant dense<0.000000e+00> : vector<8x256xf32>
    %278 = tpu.matmul %238, %277, %cst_107 {dimension_numbers = #tpu.dot_dimension_numbers<[1], [0], [0], [1], [0, 0, 1, 1], [], []>} : vector<8x128xbf16>, vector<128x256xbf16>, vector<8x256xf32> -> vector<8x256xf32>
    %279 = vector.extract_strided_slice %232 {offsets = [0, 0], sizes = [1, 256], strides = [1, 1]} : vector<2x256xf32> to vector<1x256xf32>
    %280 = vector.shape_cast %279 : vector<1x256xf32> to vector<256xf32>
    %281 = vector.shape_cast %280 : vector<256xf32> to vector<1x256xf32>
    %282 = vector.broadcast %281 : vector<1x256xf32> to vector<8x256xf32>
    %283 = arith.mulf %278, %282 : vector<8x256xf32>
    %284 = arith.addf %237, %283 : vector<8x256xf32>
    %285 = vector.extract_strided_slice %236 {offsets = [0, 0], sizes = [1, 256], strides = [1, 1]} : vector<2x256xf32> to vector<1x256xf32>
    %286 = vector.shape_cast %285 : vector<1x256xf32> to vector<256xf32>
    %287 = vector.shape_cast %286 : vector<256xf32> to vector<1x256xf32>
    %288 = vector.broadcast %241 : vector<8x1xf32> to vector<8x256xf32>
    %289 = vector.broadcast %287 : vector<1x256xf32> to vector<8x256xf32>
    %290 = arith.mulf %288, %289 : vector<8x256xf32>
    %291 = arith.subf %284, %290 : vector<8x256xf32>
    %292 = vector.extract_strided_slice %230 {offsets = [0, 128], sizes = [8, 128], strides = [1, 1]} : vector<8x256xbf16> to vector<8x128xbf16>
    %293 = vector.extract_strided_slice %229 {offsets = [0, 128], sizes = [8, 128], strides = [1, 1]} : vector<8x256xf32> to vector<8x128xf32>
    %cst_108 = arith.constant dense<0.000000e+00> : vector<8xf32>
    %294 = vector.multi_reduction <add>, %293, %cst_108 [1] : vector<8x128xf32> to vector<8xf32>
    %295 = vector.shape_cast %294 : vector<8xf32> to vector<8x1xf32>
    %c16_109 = arith.constant 16 : index
    %c0_110 = arith.constant 0 : index
    %296 = vector.load %arg9[%c16_109, %c0_110] : memref<32x256xi32, #tpu.memory_space<vmem>>, vector<16x256xi32>
    %c0_i32_111 = arith.constant 0 : i32
    %297 = vector.broadcast %c0_i32_111 : i32 to vector<16x256xi32>
    %298 = arith.shrsi %296, %297 : vector<16x256xi32>
    %c15_i32_112 = arith.constant 15 : i32
    %299 = vector.broadcast %c15_i32_112 : i32 to vector<16x256xi32>
    %300 = arith.andi %298, %299 : vector<16x256xi32>
    %c4_i32_113 = arith.constant 4 : i32
    %301 = vector.broadcast %c4_i32_113 : i32 to vector<16x256xi32>
    %302 = arith.shrsi %296, %301 : vector<16x256xi32>
    %c15_i32_114 = arith.constant 15 : i32
    %303 = vector.broadcast %c15_i32_114 : i32 to vector<16x256xi32>
    %304 = arith.andi %302, %303 : vector<16x256xi32>
    %c8_i32_115 = arith.constant 8 : i32
    %305 = vector.broadcast %c8_i32_115 : i32 to vector<16x256xi32>
    %306 = arith.shrsi %296, %305 : vector<16x256xi32>
    %c15_i32_116 = arith.constant 15 : i32
    %307 = vector.broadcast %c15_i32_116 : i32 to vector<16x256xi32>
    %308 = arith.andi %306, %307 : vector<16x256xi32>
    %c12_i32_117 = arith.constant 12 : i32
    %309 = vector.broadcast %c12_i32_117 : i32 to vector<16x256xi32>
    %310 = arith.shrsi %296, %309 : vector<16x256xi32>
    %c15_i32_118 = arith.constant 15 : i32
    %311 = vector.broadcast %c15_i32_118 : i32 to vector<16x256xi32>
    %312 = arith.andi %310, %311 : vector<16x256xi32>
    %c16_i32_119 = arith.constant 16 : i32
    %313 = vector.broadcast %c16_i32_119 : i32 to vector<16x256xi32>
    %314 = arith.shrsi %296, %313 : vector<16x256xi32>
    %c15_i32_120 = arith.constant 15 : i32
    %315 = vector.broadcast %c15_i32_120 : i32 to vector<16x256xi32>
    %316 = arith.andi %314, %315 : vector<16x256xi32>
    %c20_i32_121 = arith.constant 20 : i32
    %317 = vector.broadcast %c20_i32_121 : i32 to vector<16x256xi32>
    %318 = arith.shrsi %296, %317 : vector<16x256xi32>
    %c15_i32_122 = arith.constant 15 : i32
    %319 = vector.broadcast %c15_i32_122 : i32 to vector<16x256xi32>
    %320 = arith.andi %318, %319 : vector<16x256xi32>
    %c24_i32_123 = arith.constant 24 : i32
    %321 = vector.broadcast %c24_i32_123 : i32 to vector<16x256xi32>
    %322 = arith.shrsi %296, %321 : vector<16x256xi32>
    %c15_i32_124 = arith.constant 15 : i32
    %323 = vector.broadcast %c15_i32_124 : i32 to vector<16x256xi32>
    %324 = arith.andi %322, %323 : vector<16x256xi32>
    %c28_i32_125 = arith.constant 28 : i32
    %325 = vector.broadcast %c28_i32_125 : i32 to vector<16x256xi32>
    %326 = arith.shrsi %296, %325 : vector<16x256xi32>
    %c15_i32_126 = arith.constant 15 : i32
    %327 = vector.broadcast %c15_i32_126 : i32 to vector<16x256xi32>
    %328 = arith.andi %326, %327 : vector<16x256xi32>
    %329 = tpu.concatenate %300, %304, %308, %312, %316, %320, %324, %328 in 0 : vector<16x256xi32>, vector<16x256xi32>, vector<16x256xi32>, vector<16x256xi32>, vector<16x256xi32>, vector<16x256xi32>, vector<16x256xi32>, vector<16x256xi32> -> vector<128x256xi32>
    %330 = arith.sitofp %329 : vector<128x256xi32> to vector<128x256xf32>
    %331 = arith.truncf %330 : vector<128x256xf32> to vector<128x256xbf16>
    %cst_127 = arith.constant dense<0.000000e+00> : vector<8x256xf32>
    %332 = tpu.matmul %292, %331, %cst_127 {dimension_numbers = #tpu.dot_dimension_numbers<[1], [0], [0], [1], [0, 0, 1, 1], [], []>} : vector<8x128xbf16>, vector<128x256xbf16>, vector<8x256xf32> -> vector<8x256xf32>
    %333 = vector.extract_strided_slice %232 {offsets = [1, 0], sizes = [1, 256], strides = [1, 1]} : vector<2x256xf32> to vector<1x256xf32>
    %334 = vector.shape_cast %333 : vector<1x256xf32> to vector<256xf32>
    %335 = vector.shape_cast %334 : vector<256xf32> to vector<1x256xf32>
    %336 = vector.broadcast %335 : vector<1x256xf32> to vector<8x256xf32>
    %337 = arith.mulf %332, %336 : vector<8x256xf32>
    %338 = arith.addf %291, %337 : vector<8x256xf32>
    %339 = vector.extract_strided_slice %236 {offsets = [1, 0], sizes = [1, 256], strides = [1, 1]} : vector<2x256xf32> to vector<1x256xf32>
    %340 = vector.shape_cast %339 : vector<1x256xf32> to vector<256xf32>
    %341 = vector.shape_cast %340 : vector<256xf32> to vector<1x256xf32>
    %342 = vector.broadcast %295 : vector<8x1xf32> to vector<8x256xf32>
    %343 = vector.broadcast %341 : vector<1x256xf32> to vector<8x256xf32>
    %344 = arith.mulf %342, %343 : vector<8x256xf32>
    %345 = arith.subf %338, %344 : vector<8x256xf32>
    %c0_128 = arith.constant 0 : index
    %c0_129 = arith.constant 0 : index
    %346 = vector.load %arg13[%c0_128, %c0_129] : memref<8x256xf32, #tpu.memory_space<vmem>>, vector<8x256xf32>
    %347 = arith.addf %346, %345 : vector<8x256xf32>
    %c0_130 = arith.constant 0 : index
    %c0_131 = arith.constant 0 : index
    %348 = vector.load %arg13[%c0_130, %c0_131] : memref<8x256xf32, #tpu.memory_space<vmem>>, vector<8x256xf32>
    tpu.vector_store %arg13[%c0_130, %c0_131], %347 {strides = array<i32>} : memref<8x256xf32, #tpu.memory_space<vmem>>, vector<8x256xf32>,
    %c1_i32 = arith.constant 1 : i32
    %349 = arith.cmpi eq, %arg1, %c1_i32 : i32
    %350 = arith.extui %349 : i1 to i32
    %c0_i32_132 = arith.constant 0 : i32
    %351 = arith.cmpi ne, %350, %c0_i32_132 : i32
    scf.if %351 {
      %c0_133 = arith.constant 0 : index
      %c0_134 = arith.constant 0 : index
      %352 = vector.load %arg13[%c0_133, %c0_134] : memref<8x256xf32, #tpu.memory_space<vmem>>, vector<8x256xf32>
      %c0_135 = arith.constant 0 : index
      %c0_136 = arith.constant 0 : index
      %353 = vector.load %arg12[%c0_135, %c0_136] : memref<8x256xf32, #tpu.memory_space<vmem>>, vector<8x256xf32>
      tpu.vector_store %arg12[%c0_135, %c0_136], %352 {strides = array<i32>} : memref<8x256xf32, #tpu.memory_space<vmem>>, vector<8x256xf32>,
    } else {
    }
    return
  }
  func.func @transform_0(%arg0: i32, %arg1: i32) -> (i32, i32) {
    %c0_i32 = arith.constant 0 : i32
    %c0_i32_0 = arith.constant 0 : i32
    return %arg0, %c0_i32 : i32, i32
  }
  func.func @transform_1(%arg0: i32, %arg1: i32) -> (i32, i32) {
    %c0_i32 = arith.constant 0 : i32
    %c0_i32_0 = arith.constant 0 : i32
    return %c0_i32, %arg1 : i32, i32
  }
  func.func @transform_2(%arg0: i32, %arg1: i32) -> (i32, i32) {
    %c0_i32 = arith.constant 0 : i32
    %c0_i32_0 = arith.constant 0 : i32
    return %c0_i32, %arg1 : i32, i32
  }
  func.func @transform_3(%arg0: i32, %arg1: i32) -> (i32, i32) {
    %c0_i32 = arith.constant 0 : i32
    %c0_i32_0 = arith.constant 0 : i32
    return %c0_i32, %arg1 : i32, i32
  }
  func.func @transform_4(%arg0: i32, %arg1: i32) -> (i32, i32) {
    %c0_i32 = arith.constant 0 : i32
    %c0_i32_0 = arith.constant 0 : i32
    return %c0_i32, %arg1 : i32, i32
  }
  func.func @transform_5(%arg0: i32, %arg1: i32) -> (i32, i32) {
    %c0_i32 = arith.constant 0 : i32
    %c0_i32_0 = arith.constant 0 : i32
    return %c0_i32, %arg1 : i32, i32
  }
  func.func @transform_6(%arg0: i32, %arg1: i32) -> (i32, i32) {
    %c0_i32 = arith.constant 0 : i32
    %c0_i32_0 = arith.constant 0 : i32
    return %c0_i32, %arg1 : i32, i32
  }
  func.func @transform_7(%arg0: i32, %arg1: i32) -> (i32, i32) {
    %c0_i32 = arith.constant 0 : i32
    %c0_i32_0 = arith.constant 0 : i32
    return %arg1, %c0_i32 : i32, i32
  }
  func.func @transform_8(%arg0: i32, %arg1: i32) -> (i32, i32, i32) {
    %c0_i32 = arith.constant 0 : i32
    %c0_i32_0 = arith.constant 0 : i32
    %c0_i32_1 = arith.constant 0 : i32
    return %arg1, %c0_i32, %c0_i32_0 : i32, i32, i32
  }
  func.func @transform_9(%arg0: i32, %arg1: i32) -> (i32, i32, i32) {
    %c0_i32 = arith.constant 0 : i32
    %c0_i32_0 = arith.constant 0 : i32
    %c0_i32_1 = arith.constant 0 : i32
    return %arg1, %c0_i32, %c0_i32_0 : i32, i32, i32
  }
  func.func @transform_10(%arg0: i32, %arg1: i32) -> (i32, i32) {
    %c0_i32 = arith.constant 0 : i32
    %c0_i32_0 = arith.constant 0 : i32
    return %arg0, %c0_i32 : i32, i32
  }
}

</mosaic_0001>

<llo_original>
// kernel: tpu_custom_call.1
$region0: #{tpu_custom_call.1}
  #allocation0 [shape = 'u32[]', space=smem, size = 0x4, offset = 0x4, fixed_abs, tag = 'smem constant byte address 0x4 - core index']
  #allocation1 [shape = 'u32[144,128]{1,0:T(1,128)}', space=vmem, size = 0x12000, scoped, tag = 'internal scratch']
  #allocation2 [shape = 'f32[8,256]{1,0:T(8,128)}', space=vmem, size = 0x2000, scoped, tag = 'scratch operand']
  %s0 = inlined_call_operand.hbm [shape: f32[8,256], index: 0, kind: input, shape index: {}]
  %s1 = inlined_call_operand.hbm [shape: s32[32,512], index: 1, kind: input, shape index: {}]
  %s2 = inlined_call_operand.hbm [shape: f32[2,512], index: 2, kind: input, shape index: {}]
  %s3 = inlined_call_operand.vmem [shape: s32[2,512], index: 3, kind: input, shape index: {}]
  %s4 = inlined_call_operand.hbm [shape: s32[32,512], index: 4, kind: input, shape index: {}]
  %s5 = inlined_call_operand.vmem [shape: f32[2,512], index: 5, kind: input, shape index: {}]
  %s6 = inlined_call_operand.hbm [shape: s32[2,512], index: 6, kind: input, shape index: {}]
  %s7 = inlined_call_operand.hbm [shape: s32[64,256], index: 7, kind: input, shape index: {}]
  %s8 = inlined_call_operand.vmem [shape: f32[2,2,256], index: 8, kind: input, shape index: {}]
  %s9 = inlined_call_operand.vmem [shape: s32[2,2,256], index: 9, kind: input, shape index: {}]
  %s10 = inlined_call_operand.hbm [shape: f32[8,256], index: 10, kind: output, shape index: {}]
  %s11 = sld [smem:[#allocation0]]
  $region105: #{tpu_custom_call.1} parent=0
    _
  %s13 = ssub.s32 1, %s11
  %s14 = scalar_select 0, %s13, %s11
  $region1: #{tpu_custom_call.1} parent=0
    #allocation3 [shape = 'u8[8192]{0}', space=vmem, size = 0x2000, scoped, tag = 'input window, operand 0, single buffered']
    #allocation4 [shape = 's32[2]{0}', space=sflag, size = 0x8, scoped, tag = 'scoped memory for tpu_custom_call.1']
    #allocation5 [shape = 's32[2]{0}', space=sflag, size = 0x8, scoped, tag = 'scoped memory for tpu_custom_call.1']
    #allocation6 [shape = 'u8[65536]{0}', space=vmem, size = 0x10000, scoped, tag = 'input window, operand 1']
    #allocation7 [shape = 's32[2]{0}', space=sflag, size = 0x8, scoped, tag = 'scoped memory for tpu_custom_call.1']
    #allocation8 [shape = 'u8[4096]{0}', space=vmem, size = 0x1000, scoped, tag = 'input window, operand 2']
    #allocation9 [shape = 'u8[65536]{0}', space=vmem, size = 0x10000, scoped, tag = 'input window, operand 4']
    #allocation10 [shape = 's32[2]{0}', space=sflag, size = 0x8, scoped, tag = 'scoped memory for tpu_custom_call.1']
    #allocation11 [shape = 'u8[4096]{0}', space=vmem, size = 0x1000, scoped, tag = 'input window, operand 6']
    #allocation12 [shape = 'u8[65536]{0}', space=vmem, size = 0x10000, scoped, tag = 'input window, operand 7']
    #allocation13 [shape = 's32[2]{0}', space=sflag, size = 0x8, scoped, tag = 'scoped memory for tpu_custom_call.1']
    #allocation14 [shape = 'u8[8192]{0}', space=vmem, size = 0x2000, scoped, tag = 'output window, operand 0, single buffered']
    %15 = vsyncpa [#allocation4], 0
    %16 = vsyncpa [#allocation7], 0
    %s17 = scalar_lea.sflag [#allocation7], 1
    %18 = vsyncpa %s17, 0
    %19 = vsyncpa [#allocation10], 0
    %s20 = scalar_lea.sflag [#allocation10], 1
    %21 = vsyncpa %s20, 0
    %22 = vsyncpa [#allocation13], 0
    %s23 = scalar_lea.sflag [#allocation13], 1
    %24 = vsyncpa %s23, 0
    %25 = vsyncpa [#allocation5], 0
    loop: start=0, step=1, limit=4
    $region2: #{tpu_custom_call.1} parent=1 // loop_pre_header
      _
    $region3: #{tpu_custom_call.1} parent=1 // loop_header
      %s27 = sphi 0, %s31
      %p28 = scmp.ge.s32.totalorder %s27, 4
      %s34 = sphi 0, %s46
      %s35 = sphi 0, %s42
      %s36 = sphi 0, %s34
      %s37 = sphi 0, %s35
      %s38 = sphi 0, %s36
      %s39 = sphi 0, %s37
      %s49 = sphi 0, %s51
      %s52 = sphi 0, %s49
      %s53 = sphi 0, %s52
      %s69 = sphi 0, %s53
      %s75 = sphi 0, %s77
      %s78 = sphi 0, %s75
      %s79 = sphi 0, %s78
      %s95 = sphi 0, %s79
      %s101 = sphi 0, %s103
      %s104 = sphi 0, %s101
      %s105 = sphi 0, %s104
      %s121 = sphi 0, %s105
      %s127 = sphi 0, %s129
      %s130 = sphi 0, %s127
      %s131 = sphi 0, %s130
      %s147 = sphi 0, %s131
      %s153 = sphi 0, %s155
      %s156 = sphi 0, %s153
      %s157 = sphi 0, %s156
      %s173 = sphi 0, %s157
      %s179 = sphi 0, %s181
      %s182 = sphi 0, %s179
      %s183 = sphi 0, %s182
      %s199 = sphi 0, %s183
      %s205 = sphi 0, %s207
      %s208 = sphi 0, %s205
      %s209 = sphi 0, %s208
      %s225 = sphi 0, %s209
      %s231 = sphi 0, %s233
      %s234 = sphi 0, %s231
      %s235 = sphi 0, %s234
      %s251 = sphi 0, %s235
      %s257 = sphi 0, %s259
      %s260 = sphi 0, %s257
      %s261 = sphi 0, %s260
      %s277 = sphi 0, %s261
      %s283 = sphi 0, %s285
      %s286 = sphi 0, %s283
      %s287 = sphi 0, %s286
      %s303 = sphi 0, %s287
      %s309 = sphi 0, %s311
      %s312 = sphi 0, %s309
      %s313 = sphi 0, %s312
      %s329 = sphi 0, %s313
    $region4: #{tpu_custom_call.1} parent=1 // loop_header_branch
      %30 = sbr.rel (%p28) target = $region8
    $region5: #{tpu_custom_call.1} parent=1 // loop_body
      %s32 = ssub.s32 %s27, 1
      %s33 = ssub.s32 %s27, 2
      %s40 = sadd.s32 1, %s35
      %p41 = scmp.ge.s32.totalorder %s40, 2
      %s42 = scalar_select %p41, 0, %s40
      %s43 = sadd.s32 1, %s34
      %s44 = scalar_select %p41, %s43, %s34
      %p45 = scmp.ge.s32.totalorder %s44, 1
      %s46 = scalar_select %p45, 0, %s44
      %s47 = ssub.s32 %s34, %s46
      %p48 = scmp.eq.s32.totalorder %s47, 0
      %s50 = sadd.s32 %s49, 1
      %s51 = scalar_select %p48, %s49, %s50
      %p54 = pneg %p48
      %p55 = scmp.eq.s32.totalorder %s27, 1
      %p56 = por %p54, %p55
      %p57 = scmp.ne.s32.totalorder %s49, %s52
      %p58 = scmp.eq.s32.totalorder %s27, 0
      %p59 = por %p57, %p58
      %p60 = scmp.ne.s32.totalorder %s49, %s52
      %p61 = scmp.eq.s32.totalorder %s32, 1
      %p62 = por %p60, %p61
      %p63 = scmp.ne.s32.totalorder %s52, %s53
      %p64 = scmp.eq.s32.totalorder %s32, 0
      %p65 = por %p63, %p64
      %p66 = scmp.ne.s32.totalorder %s52, %s53
      %p67 = scmp.eq.s32.totalorder %s33, 1
      %p68 = por %p66, %p67
      %p70 = scmp.ne.s32.totalorder %s53, %s69
      %p71 = scmp.eq.s32.totalorder %s33, 0
      %p72 = por %p70, %p71
      %s73 = ssub.s32 %s35, %s42
      %p74 = scmp.eq.s32.totalorder %s73, 0
      %s76 = sadd.s32 %s75, 1
      %s77 = scalar_select %p74, %s75, %s76
      %p80 = pneg %p74
      %p81 = scmp.eq.s32.totalorder %s27, 1
      %p82 = por %p80, %p81
      %p83 = scmp.ne.s32.totalorder %s75, %s78
      %p84 = scmp.eq.s32.totalorder %s27, 0
      %p85 = por %p83, %p84
      %p86 = scmp.ne.s32.totalorder %s75, %s78
      %p87 = scmp.eq.s32.totalorder %s32, 1
      %p88 = por %p86, %p87
      %p89 = scmp.ne.s32.totalorder %s78, %s79
      %p90 = scmp.eq.s32.totalorder %s32, 0
      %p91 = por %p89, %p90
      %p92 = scmp.ne.s32.totalorder %s78, %s79
      %p93 = scmp.eq.s32.totalorder %s33, 1
      %p94 = por %p92, %p93
      %p96 = scmp.ne.s32.totalorder %s79, %s95
      %p97 = scmp.eq.s32.totalorder %s33, 0
      %p98 = por %p96, %p97
      %s99 = ssub.s32 %s35, %s42
      %p100 = scmp.eq.s32.totalorder %s99, 0
      %s102 = sadd.s32 %s101, 1
      %s103 = scalar_select %p100, %s101, %s102
      %p106 = pneg %p100
      %p107 = scmp.eq.s32.totalorder %s27, 1
      %p108 = por %p106, %p107
      %p109 = scmp.ne.s32.totalorder %s101, %s104
      %p110 = scmp.eq.s32.totalorder %s27, 0
      %p111 = por %p109, %p110
      %p112 = scmp.ne.s32.totalorder %s101, %s104
      %p113 = scmp.eq.s32.totalorder %s32, 1
      %p114 = por %p112, %p113
      %p115 = scmp.ne.s32.totalorder %s104, %s105
      %p116 = scmp.eq.s32.totalorder %s32, 0
      %p117 = por %p115, %p116
      %p118 = scmp.ne.s32.totalorder %s104, %s105
      %p119 = scmp.eq.s32.totalorder %s33, 1
      %p120 = por %p118, %p119
      %p122 = scmp.ne.s32.totalorder %s105, %s121
      %p123 = scmp.eq.s32.totalorder %s33, 0
      %p124 = por %p122, %p123
      %s125 = ssub.s32 %s35, %s42
      %p126 = scmp.eq.s32.totalorder %s125, 0
      %s128 = sadd.s32 %s127, 1
      %s129 = scalar_select %p126, %s127, %s128
      %p132 = pneg %p126
      %p133 = scmp.eq.s32.totalorder %s27, 1
      %p134 = por %p132, %p133
      %p135 = scmp.ne.s32.totalorder %s127, %s130
      %p136 = scmp.eq.s32.totalorder %s27, 0
      %p137 = por %p135, %p136
      %p138 = scmp.ne.s32.totalorder %s127, %s130
      %p139 = scmp.eq.s32.totalorder %s32, 1
      %p140 = por %p138, %p139
      %p141 = scmp.ne.s32.totalorder %s130, %s131
      %p142 = scmp.eq.s32.totalorder %s32, 0
      %p143 = por %p141, %p142
      %p144 = scmp.ne.s32.totalorder %s130, %s131
      %p145 = scmp.eq.s32.totalorder %s33, 1
      %p146 = por %p144, %p145
      %p148 = scmp.ne.s32.totalorder %s131, %s147
      %p149 = scmp.eq.s32.totalorder %s33, 0
      %p150 = por %p148, %p149
      %s151 = ssub.s32 %s35, %s42
      %p152 = scmp.eq.s32.totalorder %s151, 0
      %s154 = sadd.s32 %s153, 1
      %s155 = scalar_select %p152, %s153, %s154
      %p158 = pneg %p152
      %p159 = scmp.eq.s32.totalorder %s27, 1
      %p160 = por %p158, %p159
      %p161 = scmp.ne.s32.totalorder %s153, %s156
      %p162 = scmp.eq.s32.totalorder %s27, 0
      %p163 = por %p161, %p162
      %p164 = scmp.ne.s32.totalorder %s153, %s156
      %p165 = scmp.eq.s32.totalorder %s32, 1
      %p166 = por %p164, %p165
      %p167 = scmp.ne.s32.totalorder %s156, %s157
      %p168 = scmp.eq.s32.totalorder %s32, 0
      %p169 = por %p167, %p168
      %p170 = scmp.ne.s32.totalorder %s156, %s157
      %p171 = scmp.eq.s32.totalorder %s33, 1
      %p172 = por %p170, %p171
      %p174 = scmp.ne.s32.totalorder %s157, %s173
      %p175 = scmp.eq.s32.totalorder %s33, 0
      %p176 = por %p174, %p175
      %s177 = ssub.s32 %s35, %s42
      %p178 = scmp.eq.s32.totalorder %s177, 0
      %s180 = sadd.s32 %s179, 1
      %s181 = scalar_select %p178, %s179, %s180
      %p184 = pneg %p178
      %p185 = scmp.eq.s32.totalorder %s27, 1
      %p186 = por %p184, %p185
      %p187 = scmp.ne.s32.totalorder %s179, %s182
      %p188 = scmp.eq.s32.totalorder %s27, 0
      %p189 = por %p187, %p188
      %p190 = scmp.ne.s32.totalorder %s179, %s182
      %p191 = scmp.eq.s32.totalorder %s32, 1
      %p192 = por %p190, %p191
      %p193 = scmp.ne.s32.totalorder %s182, %s183
      %p194 = scmp.eq.s32.totalorder %s32, 0
      %p195 = por %p193, %p194
      %p196 = scmp.ne.s32.totalorder %s182, %s183
      %p197 = scmp.eq.s32.totalorder %s33, 1
      %p198 = por %p196, %p197
      %p200 = scmp.ne.s32.totalorder %s183, %s199
      %p201 = scmp.eq.s32.totalorder %s33, 0
      %p202 = por %p200, %p201
      %s203 = ssub.s32 %s35, %s42
      %p204 = scmp.eq.s32.totalorder %s203, 0
      %s206 = sadd.s32 %s205, 1
      %s207 = scalar_select %p204, %s205, %s206
      %p210 = pneg %p204
      %p211 = scmp.eq.s32.totalorder %s27, 1
      %p212 = por %p210, %p211
      %p213 = scmp.ne.s32.totalorder %s205, %s208
      %p214 = scmp.eq.s32.totalorder %s27, 0
      %p215 = por %p213, %p214
      %p216 = scmp.ne.s32.totalorder %s205, %s208
      %p217 = scmp.eq.s32.totalorder %s32, 1
      %p218 = por %p216, %p217
      %p219 = scmp.ne.s32.totalorder %s208, %s209
      %p220 = scmp.eq.s32.totalorder %s32, 0
      %p221 = por %p219, %p220
      %p222 = scmp.ne.s32.totalorder %s208, %s209
      %p223 = scmp.eq.s32.totalorder %s33, 1
      %p224 = por %p222, %p223
      %p226 = scmp.ne.s32.totalorder %s209, %s225
      %p227 = scmp.eq.s32.totalorder %s33, 0
      %p228 = por %p226, %p227
      %s229 = ssub.s32 %s35, %s42
      %p230 = scmp.eq.s32.totalorder %s229, 0
      %s232 = sadd.s32 %s231, 1
      %s233 = scalar_select %p230, %s231, %s232
      %p236 = pneg %p230
      %p237 = scmp.eq.s32.totalorder %s27, 1
      %p238 = por %p236, %p237
      %p239 = scmp.ne.s32.totalorder %s231, %s234
      %p240 = scmp.eq.s32.totalorder %s27, 0
      %p241 = por %p239, %p240
      %p242 = scmp.ne.s32.totalorder %s231, %s234
      %p243 = scmp.eq.s32.totalorder %s32, 1
      %p244 = por %p242, %p243
      %p245 = scmp.ne.s32.totalorder %s234, %s235
      %p246 = scmp.eq.s32.totalorder %s32, 0
      %p247 = por %p245, %p246
      %p248 = scmp.ne.s32.totalorder %s234, %s235
      %p249 = scmp.eq.s32.totalorder %s33, 1
      %p250 = por %p248, %p249
      %p252 = scmp.ne.s32.totalorder %s235, %s251
      %p253 = scmp.eq.s32.totalorder %s33, 0
      %p254 = por %p252, %p253
      %s255 = ssub.s32 %s35, %s42
      %p256 = scmp.eq.s32.totalorder %s255, 0
      %s258 = sadd.s32 %s257, 1
      %s259 = scalar_select %p256, %s257, %s258
      %p262 = pneg %p256
      %p263 = scmp.eq.s32.totalorder %s27, 1
      %p264 = por %p262, %p263
      %p265 = scmp.ne.s32.totalorder %s257, %s260
      %p266 = scmp.eq.s32.totalorder %s27, 0
      %p267 = por %p265, %p266
      %p268 = scmp.ne.s32.totalorder %s257, %s260
      %p269 = scmp.eq.s32.totalorder %s32, 1
      %p270 = por %p268, %p269
      %p271 = scmp.ne.s32.totalorder %s260, %s261
      %p272 = scmp.eq.s32.totalorder %s32, 0
      %p273 = por %p271, %p272
      %p274 = scmp.ne.s32.totalorder %s260, %s261
      %p275 = scmp.eq.s32.totalorder %s33, 1
      %p276 = por %p274, %p275
      %p278 = scmp.ne.s32.totalorder %s261, %s277
      %p279 = scmp.eq.s32.totalorder %s33, 0
      %p280 = por %p278, %p279
      %s281 = ssub.s32 %s35, %s42
      %p282 = scmp.eq.s32.totalorder %s281, 0
      %s284 = sadd.s32 %s283, 1
      %s285 = scalar_select %p282, %s283, %s284
      %p288 = pneg %p282
      %p289 = scmp.eq.s32.totalorder %s27, 1
      %p290 = por %p288, %p289
      %p291 = scmp.ne.s32.totalorder %s283, %s286
      %p292 = scmp.eq.s32.totalorder %s27, 0
      %p293 = por %p291, %p292
      %p294 = scmp.ne.s32.totalorder %s283, %s286
      %p295 = scmp.eq.s32.totalorder %s32, 1
      %p296 = por %p294, %p295
      %p297 = scmp.ne.s32.totalorder %s286, %s287
      %p298 = scmp.eq.s32.totalorder %s32, 0
      %p299 = por %p297, %p298
      %p300 = scmp.ne.s32.totalorder %s286, %s287
      %p301 = scmp.eq.s32.totalorder %s33, 1
      %p302 = por %p300, %p301
      %p304 = scmp.ne.s32.totalorder %s287, %s303
      %p305 = scmp.eq.s32.totalorder %s33, 0
      %p306 = por %p304, %p305
      %s307 = ssub.s32 %s34, %s46
      %p308 = scmp.eq.s32.totalorder %s307, 0
      %s310 = sadd.s32 %s309, 1
      %s311 = scalar_select %p308, %s309, %s310
      %p314 = pneg %p308
      %p315 = scmp.eq.s32.totalorder %s27, 1
      %p316 = por %p314, %p315
      %p317 = scmp.ne.s32.totalorder %s309, %s312
      %p318 = scmp.eq.s32.totalorder %s27, 0
      %p319 = por %p317, %p318
      %p320 = scmp.ne.s32.totalorder %s309, %s312
      %p321 = scmp.eq.s32.totalorder %s32, 1
      %p322 = por %p320, %p321
      %p323 = scmp.ne.s32.totalorder %s312, %s313
      %p324 = scmp.eq.s32.totalorder %s32, 0
      %p325 = por %p323, %p324
      %p326 = scmp.ne.s32.totalorder %s312, %s313
      %p327 = scmp.eq.s32.totalorder %s33, 1
      %p328 = por %p326, %p327
      %p330 = scmp.ne.s32.totalorder %s313, %s329
      %p331 = scmp.eq.s32.totalorder %s33, 0
      %p332 = por %p330, %p331
      %p333 = scmp.le.s32.totalorder 1, %s27
      %p334 = scmp.lt.s32.totalorder %s27, 3
      %p335 = pnand %p333, %p334
      %p336 = pneg %p335
      // Predicated region
      $region9: #{tpu_custom_call.1} parent=5 // pred_check
        _
      $region10: #{tpu_custom_call.1} parent=5 // pred_check_branch
        %338 = sbr.rel (%p335) target = $region12
      $region11: #{tpu_custom_call.1} parent=5 // pred_region
        %s339 = ssub.s32 %s27, 1
        // Predicated region
        $region13: #{tpu_custom_call.1} parent=11 // pred_check
          %p340 = pneg %p65
        $region14: #{tpu_custom_call.1} parent=11 // pred_check_branch
          %342 = sbr.rel (%p340) target = $region16
        $region15: #{tpu_custom_call.1} parent=11 // pred_region
          %s344 = ssub.s32 256, 256
          %345 = vsyncadd [#allocation4], %s344
          %s346 = smul.addr %s36, 2
          %s347 = smul.addr %s346, 128
          %s348 = scalar_lea.hbm %s0, %s347
          %s350 = sshll.u32 [#allocation3], 4
          %s351 = int_to_ptr.vmem [resolvable:$true] %s350
          %353 = dma.hbm_to_vmem [thread:$0]  %s348, 256, %s351, [#allocation4]
        $region16: #{tpu_custom_call.1} parent=11 // pred_fallthru
          _
      $region12: #{tpu_custom_call.1} parent=5 // pred_fallthru
        _
      %p354 = scmp.lt.s32.totalorder %s27, 2
      // Predicated region
      $region17: #{tpu_custom_call.1} parent=5 // pred_check
        %p355 = pneg %p354
      $region18: #{tpu_custom_call.1} parent=5 // pred_check_branch
        %357 = sbr.rel (%p355) target = $region20
      $region19: #{tpu_custom_call.1} parent=5 // pred_region
        // Predicated region
        $region21: #{tpu_custom_call.1} parent=19 // pred_check
          %p358 = pneg %p85
        $region22: #{tpu_custom_call.1} parent=19 // pred_check_branch
          %360 = sbr.rel (%p358) target = $region24
        $region23: #{tpu_custom_call.1} parent=19 // pred_region
          %s361 = sand.u32 %s27, 1
          %s362 = scalar_lea.sflag [#allocation7], %s361
          %s363 = sand.u32 %s75, 1
          %s364 = smul.addr %s363, 64
          %s365 = scalar_lea.vmem [#allocation6], %s364
          %s366 = smul.u32 2, %s35
          %s368 = ssub.s32 1024, 1024
          %369 = vsyncadd %s362, %s368
          %s370 = smul.addr %s366, 128
          %s371 = scalar_lea.hbm %s1, %s370
          %s372 = sshll.u32 %s365, 4
          %s373 = int_to_ptr.vmem [resolvable:$true] %s372
          %378 = dma.hbm_to_vmem [thread:$0]  %s371, 1024, %s373, %s362, 512, 256, 16
        $region24: #{tpu_custom_call.1} parent=19 // pred_fallthru
          _
        // Predicated region
        $region25: #{tpu_custom_call.1} parent=19 // pred_check
          %p379 = pneg %p111
        $region26: #{tpu_custom_call.1} parent=19 // pred_check_branch
          %381 = sbr.rel (%p379) target = $region28
        $region27: #{tpu_custom_call.1} parent=19 // pred_region
          %s382 = sand.u32 %s27, 1
          %s383 = scalar_lea.sflag [#allocation7], %s382
          %s384 = sand.u32 %s101, 1
          %s385 = smul.addr %s384, 4
          %s386 = scalar_lea.vmem [#allocation8], %s385
          %s387 = smul.u32 2, %s35
          %s389 = ssub.s32 64, 64
          %390 = vsyncadd %s383, %s389
          %s391 = smul.addr %s387, 32
          %s392 = scalar_lea.hbm %s2, %s391
          %s394 = sshll.u32 %s386, 4
          %s395 = int_to_ptr.vmem [resolvable:$true] %s394
          %397 = dma.hbm_to_vmem [thread:$0]  %s392, 64, %s395, %s383
        $region28: #{tpu_custom_call.1} parent=19 // pred_fallthru
          _
        // Predicated region
        $region29: #{tpu_custom_call.1} parent=19 // pred_check
          %p398 = pneg %p137
        $region30: #{tpu_custom_call.1} parent=19 // pred_check_branch
          %400 = sbr.rel (%p398) target = $region32
        $region31: #{tpu_custom_call.1} parent=19 // pred_region
          %s401 = smul.u32 2, %s35
          %p402 = scmp.lt.s32.totalorder %s401, 3
          %s403 = scalar_select %p402, %s401, 3
          %s404 = smul.addr %s403, 2
          %s405 = scalar_lea.vmem %s3, %s404
          %s406 = smul.u32 2, %s35
        $region32: #{tpu_custom_call.1} parent=19 // pred_fallthru
          _
        // Predicated region
        $region33: #{tpu_custom_call.1} parent=19 // pred_check
          %p407 = pneg %p163
        $region34: #{tpu_custom_call.1} parent=19 // pred_check_branch
          %409 = sbr.rel (%p407) target = $region36
        $region35: #{tpu_custom_call.1} parent=19 // pred_region
          %s410 = sand.u32 %s27, 1
          %s411 = scalar_lea.sflag [#allocation10], %s410
          %s412 = sand.u32 %s153, 1
          %s413 = smul.addr %s412, 64
          %s414 = scalar_lea.vmem [#allocation9], %s413
          %s415 = smul.u32 2, %s35
          %s417 = ssub.s32 1024, 1024
          %418 = vsyncadd %s411, %s417
          %s419 = smul.addr %s415, 128
          %s420 = scalar_lea.hbm %s4, %s419
          %s421 = sshll.u32 %s414, 4
          %s422 = int_to_ptr.vmem [resolvable:$true] %s421
          %427 = dma.hbm_to_vmem [thread:$0]  %s420, 1024, %s422, %s411, 512, 256, 16
        $region36: #{tpu_custom_call.1} parent=19 // pred_fallthru
          _
        // Predicated region
        $region37: #{tpu_custom_call.1} parent=19 // pred_check
          %p428 = pneg %p189
        $region38: #{tpu_custom_call.1} parent=19 // pred_check_branch
          %430 = sbr.rel (%p428) target = $region40
        $region39: #{tpu_custom_call.1} parent=19 // pred_region
          %s431 = smul.u32 2, %s35
          %p432 = scmp.lt.s32.totalorder %s431, 3
          %s433 = scalar_select %p432, %s431, 3
          %s434 = smul.addr %s433, 2
          %s435 = scalar_lea.vmem %s5, %s434
          %s436 = smul.u32 2, %s35
        $region40: #{tpu_custom_call.1} parent=19 // pred_fallthru
          _
        // Predicated region
        $region41: #{tpu_custom_call.1} parent=19 // pred_check
          %p437 = pneg %p215
        $region42: #{tpu_custom_call.1} parent=19 // pred_check_branch
          %439 = sbr.rel (%p437) target = $region44
        $region43: #{tpu_custom_call.1} parent=19 // pred_region
          %s440 = sand.u32 %s27, 1
          %s441 = scalar_lea.sflag [#allocation10], %s440
          %s442 = sand.u32 %s205, 1
          %s443 = smul.addr %s442, 4
          %s444 = scalar_lea.vmem [#allocation11], %s443
          %s445 = smul.u32 2, %s35
          %s447 = ssub.s32 64, 64
          %448 = vsyncadd %s441, %s447
          %s449 = smul.addr %s445, 32
          %s450 = scalar_lea.hbm %s6, %s449
          %s452 = sshll.u32 %s444, 4
          %s453 = int_to_ptr.vmem [resolvable:$true] %s452
          %455 = dma.hbm_to_vmem [thread:$0]  %s450, 64, %s453, %s441
        $region44: #{tpu_custom_call.1} parent=19 // pred_fallthru
          _
        // Predicated region
        $region45: #{tpu_custom_call.1} parent=19 // pred_check
          %p456 = pneg %p241
        $region46: #{tpu_custom_call.1} parent=19 // pred_check_branch
          %458 = sbr.rel (%p456) target = $region48
        $region47: #{tpu_custom_call.1} parent=19 // pred_region
          %s459 = sand.u32 %s231, 1
          %s460 = scalar_lea.sflag [#allocation13], %s459
          %s461 = sand.u32 %s231, 1
          %s462 = smul.addr %s461, 64
          %s463 = scalar_lea.vmem [#allocation12], %s462
          %s464 = smul.u32 4, %s35
          %s466 = ssub.s32 1024, 1024
          %467 = vsyncadd %s460, %s466
          %s468 = smul.addr %s464, 2
          %s469 = smul.addr %s468, 128
          %s470 = scalar_lea.hbm %s7, %s469
          %s471 = sshll.u32 %s463, 4
          %s472 = int_to_ptr.vmem [resolvable:$true] %s471
          %477 = dma.hbm_to_vmem [thread:$0]  %s470, 1024, %s472, %s460, 256, 256, 16
        $region48: #{tpu_custom_call.1} parent=19 // pred_fallthru
          _
        // Predicated region
        $region49: #{tpu_custom_call.1} parent=19 // pred_check
          %p478 = pneg %p267
        $region50: #{tpu_custom_call.1} parent=19 // pred_check_branch
          %480 = sbr.rel (%p478) target = $region52
        $region51: #{tpu_custom_call.1} parent=19 // pred_region
          %p481 = scmp.lt.s32.totalorder %s35, 1
          %s482 = scalar_select %p481, %s35, 1
          %s483 = smul.addr %s482, 2
          %s484 = smul.addr %s483, 2
          %s485 = scalar_lea.vmem %s8, %s484
        $region52: #{tpu_custom_call.1} parent=19 // pred_fallthru
          _
        // Predicated region
        $region53: #{tpu_custom_call.1} parent=19 // pred_check
          %p486 = pneg %p293
        $region54: #{tpu_custom_call.1} parent=19 // pred_check_branch
          %488 = sbr.rel (%p486) target = $region56
        $region55: #{tpu_custom_call.1} parent=19 // pred_region
          %p489 = scmp.lt.s32.totalorder %s35, 1
          %s490 = scalar_select %p489, %s35, 1
          %s491 = smul.addr %s490, 2
          %s492 = smul.addr %s491, 2
          %s493 = scalar_lea.vmem %s9, %s492
        $region56: #{tpu_custom_call.1} parent=19 // pred_fallthru
          _
      $region20: #{tpu_custom_call.1} parent=5 // pred_fallthru
        _
      %p494 = scmp.le.s32.totalorder 1, %s27
      %p495 = scmp.lt.s32.totalorder %s27, 3
      %p496 = pnand %p494, %p495
      %p497 = pneg %p496
      // Predicated region
      $region57: #{tpu_custom_call.1} parent=5 // pred_check
        _
      $region58: #{tpu_custom_call.1} parent=5 // pred_check_branch
        %499 = sbr.rel (%p496) target = $region60
      $region59: #{tpu_custom_call.1} parent=5 // pred_region
        %s500 = ssub.s32 %s27, 1
        // Predicated region
        $region61: #{tpu_custom_call.1} parent=59 // pred_check
          %p501 = pneg %p65
        $region62: #{tpu_custom_call.1} parent=59 // pred_check_branch
          %503 = sbr.rel (%p501) target = $region64
        $region63: #{tpu_custom_call.1} parent=59 // pred_region
          %504 = dma.done [#allocation4], 256
        $region64: #{tpu_custom_call.1} parent=59 // pred_fallthru
          _
        %s505 = sand.u32 %s32, 1
        %s506 = scalar_lea.sflag [#allocation7], %s505
        %s507 = sand.u32 %s78, 1
        %s508 = smul.addr %s507, 64
        %s509 = scalar_lea.vmem [#allocation6], %s508
        // Predicated region
        $region65: #{tpu_custom_call.1} parent=59 // pred_check
          %p510 = pneg %p91
        $region66: #{tpu_custom_call.1} parent=59 // pred_check_branch
          %512 = sbr.rel (%p510) target = $region68
        $region67: #{tpu_custom_call.1} parent=59 // pred_region
          %513 = dma.done %s506, 1024
        $region68: #{tpu_custom_call.1} parent=59 // pred_fallthru
          _
        %s514 = sand.u32 %s32, 1
        %s515 = scalar_lea.sflag [#allocation7], %s514
        %s516 = sand.u32 %s104, 1
        %s517 = smul.addr %s516, 4
        %s518 = scalar_lea.vmem [#allocation8], %s517
        // Predicated region
        $region69: #{tpu_custom_call.1} parent=59 // pred_check
          %p519 = pneg %p117
        $region70: #{tpu_custom_call.1} parent=59 // pred_check_branch
          %521 = sbr.rel (%p519) target = $region72
        $region71: #{tpu_custom_call.1} parent=59 // pred_region
          %522 = dma.done %s515, 64
        $region72: #{tpu_custom_call.1} parent=59 // pred_fallthru
          _
        %s523 = sand.u32 %s32, 1
        %s524 = scalar_lea.sflag [#allocation10], %s523
        %s525 = sand.u32 %s156, 1
        %s526 = smul.addr %s525, 64
        %s527 = scalar_lea.vmem [#allocation9], %s526
        // Predicated region
        $region73: #{tpu_custom_call.1} parent=59 // pred_check
          %p528 = pneg %p169
        $region74: #{tpu_custom_call.1} parent=59 // pred_check_branch
          %530 = sbr.rel (%p528) target = $region76
        $region75: #{tpu_custom_call.1} parent=59 // pred_region
          %531 = dma.done %s524, 1024
        $region76: #{tpu_custom_call.1} parent=59 // pred_fallthru
          _
        %s532 = sand.u32 %s32, 1
        %s533 = scalar_lea.sflag [#allocation10], %s532
        %s534 = sand.u32 %s208, 1
        %s535 = smul.addr %s534, 4
        %s536 = scalar_lea.vmem [#allocation11], %s535
        // Predicated region
        $region77: #{tpu_custom_call.1} parent=59 // pred_check
          %p537 = pneg %p221
        $region78: #{tpu_custom_call.1} parent=59 // pred_check_branch
          %539 = sbr.rel (%p537) target = $region80
        $region79: #{tpu_custom_call.1} parent=59 // pred_region
          %540 = dma.done %s533, 64
        $region80: #{tpu_custom_call.1} parent=59 // pred_fallthru
          _
        %s541 = sand.u32 %s234, 1
        %s542 = scalar_lea.sflag [#allocation13], %s541
        %s543 = sand.u32 %s234, 1
        %s544 = smul.addr %s543, 64
        %s545 = scalar_lea.vmem [#allocation12], %s544
        // Predicated region
        $region81: #{tpu_custom_call.1} parent=59 // pred_check
          %p546 = pneg %p247
        $region82: #{tpu_custom_call.1} parent=59 // pred_check_branch
          %548 = sbr.rel (%p546) target = $region84
        $region83: #{tpu_custom_call.1} parent=59 // pred_region
          %549 = dma.done %s542, 1024
        $region84: #{tpu_custom_call.1} parent=59 // pred_fallthru
          _
        %p550 = pneg %p65
        %p551 = pneg %p62
        %s552 = sand.u32 %s32, 1
        %s553 = scalar_lea.sflag [#allocation7], %s552
        %s554 = sand.u32 %s78, 1
        %s555 = smul.addr %s554, 64
        %s556 = scalar_lea.vmem [#allocation6], %s555
        %p557 = pneg %p91
        %p558 = pneg %p88
        %s559 = sand.u32 %s32, 1
        %s560 = scalar_lea.sflag [#allocation7], %s559
        %s561 = sand.u32 %s104, 1
        %s562 = smul.addr %s561, 4
        %s563 = scalar_lea.vmem [#allocation8], %s562
        %p564 = pneg %p117
        %p565 = pneg %p114
        %s566 = smul.u32 2, %s37
        %p567 = scmp.lt.s32.totalorder %s566, 3
        %s568 = scalar_select %p567, %s566, 3
        %s569 = smul.addr %s568, 2
        %s570 = scalar_lea.vmem %s3, %s569
        %p571 = pneg %p143
        %p572 = pneg %p140
        %s573 = sand.u32 %s32, 1
        %s574 = scalar_lea.sflag [#allocation10], %s573
        %s575 = sand.u32 %s156, 1
        %s576 = smul.addr %s575, 64
        %s577 = scalar_lea.vmem [#allocation9], %s576
        %p578 = pneg %p169
        %p579 = pneg %p166
        %s580 = smul.u32 2, %s37
        %p581 = scmp.lt.s32.totalorder %s580, 3
        %s582 = scalar_select %p581, %s580, 3
        %s583 = smul.addr %s582, 2
        %s584 = scalar_lea.vmem %s5, %s583
        %p585 = pneg %p195
        %p586 = pneg %p192
        %s587 = sand.u32 %s32, 1
        %s588 = scalar_lea.sflag [#allocation10], %s587
        %s589 = sand.u32 %s208, 1
        %s590 = smul.addr %s589, 4
        %s591 = scalar_lea.vmem [#allocation11], %s590
        %p592 = pneg %p221
        %p593 = pneg %p218
        %s594 = sand.u32 %s234, 1
        %s595 = scalar_lea.sflag [#allocation13], %s594
        %s596 = sand.u32 %s234, 1
        %s597 = smul.addr %s596, 64
        %s598 = scalar_lea.vmem [#allocation12], %s597
        %p599 = pneg %p247
        %p600 = pneg %p244
        %p601 = scmp.lt.s32.totalorder %s37, 1
        %s602 = scalar_select %p601, %s37, 1
        %s603 = smul.addr %s602, 2
        %s604 = smul.addr %s603, 2
        %s605 = scalar_lea.vmem %s8, %s604
        %p606 = pneg %p273
        %p607 = pneg %p270
        %p608 = scmp.lt.s32.totalorder %s37, 1
        %s609 = scalar_select %p608, %s37, 1
        %s610 = smul.addr %s609, 2
        %s611 = smul.addr %s610, 2
        %s612 = scalar_lea.vmem %s9, %s611
        %p613 = pneg %p299
        %p614 = pneg %p296
        %p615 = pneg %p325
        %p616 = pneg %p322
        %s617 = smul.u32 2, %s37
        %s618 = smul.u32 2, %s37
        %s619 = smul.u32 2, %s37
        %p620 = scmp.lt.s32.totalorder %s619, 3
        %s621 = scalar_select %p620, %s619, 3
        %s622 = smul.addr %s621, 2
        %s623 = scalar_lea.vmem %s3, %s622
        %s624 = smul.u32 2, %s37
        %s625 = smul.u32 2, %s37
        %s626 = smul.u32 2, %s37
        %p627 = scmp.lt.s32.totalorder %s626, 3
        %s628 = scalar_select %p627, %s626, 3
        %s629 = smul.addr %s628, 2
        %s630 = scalar_lea.vmem %s5, %s629
        %s631 = smul.u32 2, %s37
        %s632 = smul.u32 2, %s37
        %s633 = smul.u32 4, %s37
        %p634 = scmp.lt.s32.totalorder %s37, 1
        %s635 = scalar_select %p634, %s37, 1
        %s636 = smul.addr %s635, 2
        %s637 = smul.addr %s636, 2
        %s638 = scalar_lea.vmem %s8, %s637
        %p639 = scmp.lt.s32.totalorder %s37, 1
        %s640 = scalar_select %p639, %s37, 1
        %s641 = smul.addr %s640, 2
        %s642 = smul.addr %s641, 2
        %s643 = scalar_lea.vmem %s9, %s642
        %p645 = scmp.eq.s32.totalorder %s37, 0
        // Predicated region
        $region85: #{tpu_custom_call.1} parent=59 // pred_check
          %p646 = pneg %p645
        $region86: #{tpu_custom_call.1} parent=59 // pred_check_branch
          %648 = sbr.rel (%p646) target = $region88
        $region87: #{tpu_custom_call.1} parent=59 // pred_region
          %649 = vst [vmem:[#allocation2] sm:$0xff] 0.0
          %650 = vst [vmem:[#allocation2 + $0x8] sm:$0xff] 0.0
        $region88: #{tpu_custom_call.1} parent=59 // pred_fallthru
          _
        %v651 = vld [vmem:[#allocation3] sm:$0xff]
        %v652 = vld [vmem:[#allocation3 + $0x8] sm:$0xff]
        %v653 = vpack.c.bf16 %v651, %v651
        %v654 = vpack.c.bf16 %v652, %v652
        %v655 = vld [vmem:[%s518] sm:$0xf]
        %v656 = vld [vmem:[%s630] sm:$0xf]
        %v657 = vld [vmem:[%s623] sm:$0xf]
        %v658 = vcvt.s32.f32 %v657
        %v659 = vmul.f32 %v658, %v655
        %v660 = vld [vmem:[%s536] sm:$0xf]
        %v661 = vcvt.s32.f32 %v660
        %v662 = vmul.f32 %v661, %v656
        %663 = vadd.xlane.f32.xlu0 %v651
        %v664 = vpop.xlane.xlu0 %663
        %v665 = vld [vmem:[%s509] sm:$0xff]
        %v666 = vld [vmem:[%s509 + $0x8] sm:$0xff]
        %v667 = vld [vmem:[%s509 + $0x10] sm:$0xff]
        %v668 = vld [vmem:[%s509 + $0x18] sm:$0xff]
        %v669 = vand.u32 %v665, 15
        %v670 = vand.u32 %v666, 15
        %v671 = vand.u32 %v667, 15
        %v672 = vand.u32 %v668, 15
        %v673 = vshra.s32 %v665, 4
        %v674 = vshra.s32 %v666, 4
        %v675 = vshra.s32 %v667, 4
        %v676 = vshra.s32 %v668, 4
        %v677 = vand.u32 %v673, 15
        %v678 = vand.u32 %v674, 15
        %v679 = vand.u32 %v675, 15
        %v680 = vand.u32 %v676, 15
        %v681 = vshra.s32 %v665, 8
        %v682 = vshra.s32 %v666, 8
        %v683 = vshra.s32 %v667, 8
        %v684 = vshra.s32 %v668, 8
        %v685 = vand.u32 %v681, 15
        %v686 = vand.u32 %v682, 15
        %v687 = vand.u32 %v683, 15
        %v688 = vand.u32 %v684, 15
        %v689 = vshra.s32 %v665, 12
        %v690 = vshra.s32 %v666, 12
        %v691 = vshra.s32 %v667, 12
        %v692 = vshra.s32 %v668, 12
        %v693 = vand.u32 %v689, 15
        %v694 = vand.u32 %v690, 15
        %v695 = vand.u32 %v691, 15
        %v696 = vand.u32 %v692, 15
        %v697 = vshra.s32 %v665, 16
        %v698 = vshra.s32 %v666, 16
        %v699 = vshra.s32 %v667, 16
        %v700 = vshra.s32 %v668, 16
        %v701 = vand.u32 %v697, 15
        %v702 = vand.u32 %v698, 15
        %v703 = vand.u32 %v699, 15
        %v704 = vand.u32 %v700, 15
        %v705 = vshra.s32 %v665, 20
        %v706 = vshra.s32 %v666, 20
        %v707 = vshra.s32 %v667, 20
        %v708 = vshra.s32 %v668, 20
        %v709 = vand.u32 %v705, 15
        %v710 = vand.u32 %v706, 15
        %v711 = vand.u32 %v707, 15
        %v712 = vand.u32 %v708, 15
        %v713 = vshra.s32 %v665, 24
        %v714 = vshra.s32 %v666, 24
        %v715 = vshra.s32 %v667, 24
        %v716 = vshra.s32 %v668, 24
        %v717 = vand.u32 %v713, 15
        %v718 = vand.u32 %v714, 15
        %v719 = vand.u32 %v715, 15
        %v720 = vand.u32 %v716, 15
        %v721 = vshra.s32 %v665, 28
        %v722 = vshra.s32 %v666, 28
        %v723 = vshra.s32 %v667, 28
        %v724 = vshra.s32 %v668, 28
        %v725 = vand.u32 %v721, 15
        %v726 = vand.u32 %v722, 15
        %v727 = vand.u32 %v723, 15
        %v728 = vand.u32 %v724, 15
        %v729 = vcvt.s32.f32 %v669
        %v730 = vcvt.s32.f32 %v670
        %v731 = vcvt.s32.f32 %v671
        %v732 = vcvt.s32.f32 %v672
        %v733 = vcvt.s32.f32 %v677
        %v734 = vcvt.s32.f32 %v678
        %v735 = vcvt.s32.f32 %v679
        %v736 = vcvt.s32.f32 %v680
        %v737 = vcvt.s32.f32 %v685
        %v738 = vcvt.s32.f32 %v686
        %v739 = vcvt.s32.f32 %v687
        %v740 = vcvt.s32.f32 %v688
        %v741 = vcvt.s32.f32 %v693
        %v742 = vcvt.s32.f32 %v694
        %v743 = vcvt.s32.f32 %v695
        %v744 = vcvt.s32.f32 %v696
        %v745 = vcvt.s32.f32 %v701
        %v746 = vcvt.s32.f32 %v702
        %v747 = vcvt.s32.f32 %v703
        %v748 = vcvt.s32.f32 %v704
        %v749 = vcvt.s32.f32 %v709
        %v750 = vcvt.s32.f32 %v710
        %v751 = vcvt.s32.f32 %v711
        %v752 = vcvt.s32.f32 %v712
        %v753 = vcvt.s32.f32 %v717
        %v754 = vcvt.s32.f32 %v718
        %v755 = vcvt.s32.f32 %v719
        %v756 = vcvt.s32.f32 %v720
        %v757 = vcvt.s32.f32 %v725
        %v758 = vcvt.s32.f32 %v726
        %v759 = vcvt.s32.f32 %v727
        %v760 = vcvt.s32.f32 %v728
        %v761 = vpack.c.bf16 %v731, %v729
        %v762 = vpack.c.bf16 %v732, %v730
        %v763 = vpack.c.bf16 %v735, %v733
        %v764 = vpack.c.bf16 %v736, %v734
        %v765 = vpack.c.bf16 %v739, %v737
        %v766 = vpack.c.bf16 %v740, %v738
        %v767 = vpack.c.bf16 %v743, %v741
        %v768 = vpack.c.bf16 %v744, %v742
        %v769 = vpack.c.bf16 %v747, %v745
        %v770 = vpack.c.bf16 %v748, %v746
        %v771 = vpack.c.bf16 %v751, %v749
        %v772 = vpack.c.bf16 %v752, %v750
        %v773 = vpack.c.bf16 %v755, %v753
        %v774 = vpack.c.bf16 %v756, %v754
        %v775 = vpack.c.bf16 %v759, %v757
        %v776 = vpack.c.bf16 %v760, %v758
        %v777 = vld [vmem:[%s527] sm:$0xff]
        %v778 = vld [vmem:[%s527 + $0x8] sm:$0xff]
        %v779 = vld [vmem:[%s527 + $0x10] sm:$0xff]
        %v780 = vld [vmem:[%s527 + $0x18] sm:$0xff]
        %v781 = vand.u32 %v777, 15
        %v782 = vand.u32 %v778, 15
        %v783 = vand.u32 %v779, 15
        %v784 = vand.u32 %v780, 15
        %v785 = vshra.s32 %v777, 4
        %v786 = vshra.s32 %v778, 4
        %v787 = vshra.s32 %v779, 4
        %v788 = vshra.s32 %v780, 4
        %v789 = vand.u32 %v785, 15
        %v790 = vand.u32 %v786, 15
        %v791 = vand.u32 %v787, 15
        %v792 = vand.u32 %v788, 15
        %v793 = vshra.s32 %v777, 8
        %v794 = vshra.s32 %v778, 8
        %v795 = vshra.s32 %v779, 8
        %v796 = vshra.s32 %v780, 8
        %v797 = vand.u32 %v793, 15
        %v798 = vand.u32 %v794, 15
        %v799 = vand.u32 %v795, 15
        %v800 = vand.u32 %v796, 15
        %v801 = vshra.s32 %v777, 12
        %v802 = vshra.s32 %v778, 12
        %v803 = vshra.s32 %v779, 12
        %v804 = vshra.s32 %v780, 12
        %v805 = vand.u32 %v801, 15
        %v806 = vand.u32 %v802, 15
        %v807 = vand.u32 %v803, 15
        %v808 = vand.u32 %v804, 15
        %v809 = vshra.s32 %v777, 16
        %v810 = vshra.s32 %v778, 16
        %v811 = vshra.s32 %v779, 16
        %v812 = vshra.s32 %v780, 16
        %v813 = vand.u32 %v809, 15
        %v814 = vand.u32 %v810, 15
        %v815 = vand.u32 %v811, 15
        %v816 = vand.u32 %v812, 15
        %v817 = vshra.s32 %v777, 20
        %v818 = vshra.s32 %v778, 20
        %v819 = vshra.s32 %v779, 20
        %v820 = vshra.s32 %v780, 20
        %v821 = vand.u32 %v817, 15
        %v822 = vand.u32 %v818, 15
        %v823 = vand.u32 %v819, 15
        %v824 = vand.u32 %v820, 15
        %v825 = vshra.s32 %v777, 24
        %v826 = vshra.s32 %v778, 24
        %v827 = vshra.s32 %v779, 24
        %v828 = vshra.s32 %v780, 24
        %v829 = vand.u32 %v825, 15
        %v830 = vand.u32 %v826, 15
        %v831 = vand.u32 %v827, 15
        %v832 = vand.u32 %v828, 15
        %v833 = vshra.s32 %v777, 28
        %v834 = vshra.s32 %v778, 28
        %v835 = vshra.s32 %v779, 28
        %v836 = vshra.s32 %v780, 28
        %v837 = vand.u32 %v833, 15
        %v838 = vand.u32 %v834, 15
        %v839 = vand.u32 %v835, 15
        %v840 = vand.u32 %v836, 15
        %v841 = vcvt.s32.f32 %v781
        %v842 = vcvt.s32.f32 %v782
        %v843 = vcvt.s32.f32 %v783
        %v844 = vcvt.s32.f32 %v784
        %v845 = vcvt.s32.f32 %v789
        %v846 = vcvt.s32.f32 %v790
        %v847 = vcvt.s32.f32 %v791
        %v848 = vcvt.s32.f32 %v792
        %v849 = vcvt.s32.f32 %v797
        %v850 = vcvt.s32.f32 %v798
        %v851 = vcvt.s32.f32 %v799
        %v852 = vcvt.s32.f32 %v800
        %v853 = vcvt.s32.f32 %v805
        %v854 = vcvt.s32.f32 %v806
        %v855 = vcvt.s32.f32 %v807
        %v856 = vcvt.s32.f32 %v808
        %v857 = vcvt.s32.f32 %v813
        %v858 = vcvt.s32.f32 %v814
        %v859 = vcvt.s32.f32 %v815
        %v860 = vcvt.s32.f32 %v816
        %v861 = vcvt.s32.f32 %v821
        %v862 = vcvt.s32.f32 %v822
        %v863 = vcvt.s32.f32 %v823
        %v864 = vcvt.s32.f32 %v824
        %v865 = vcvt.s32.f32 %v829
        %v866 = vcvt.s32.f32 %v830
        %v867 = vcvt.s32.f32 %v831
        %v868 = vcvt.s32.f32 %v832
        %v869 = vcvt.s32.f32 %v837
        %v870 = vcvt.s32.f32 %v838
        %v871 = vcvt.s32.f32 %v839
        %v872 = vcvt.s32.f32 %v840
        %v873 = vpack.c.bf16 %v843, %v841
        %v874 = vpack.c.bf16 %v844, %v842
        %v875 = vpack.c.bf16 %v847, %v845
        %v876 = vpack.c.bf16 %v848, %v846
        %v877 = vpack.c.bf16 %v851, %v849
        %v878 = vpack.c.bf16 %v852, %v850
        %v879 = vpack.c.bf16 %v855, %v853
        %v880 = vpack.c.bf16 %v856, %v854
        %v881 = vpack.c.bf16 %v859, %v857
        %v882 = vpack.c.bf16 %v860, %v858
        %v883 = vpack.c.bf16 %v863, %v861
        %v884 = vpack.c.bf16 %v864, %v862
        %v885 = vpack.c.bf16 %v867, %v865
        %v886 = vpack.c.bf16 %v868, %v866
        %v887 = vpack.c.bf16 %v871, %v869
        %v888 = vpack.c.bf16 %v872, %v870
        %889 = vmatprep.subr.bf16.mxu0 %v762
        %890 = vmatpush1.bf16.msra.mxu0 %v761
        %891 = vmatprep.subr.bf16.mxu0 %v764
        %892 = vmatpush1.bf16.msra.mxu0 %v763
        %893 = vmatprep.subr.bf16.mxu0 %v766
        %894 = vmatpush1.bf16.msra.mxu0 %v765
        %895 = vmatprep.subr.bf16.mxu0 %v768
        %896 = vmatpush1.bf16.msra.mxu0 %v767
        %897 = vmatprep.subr.bf16.mxu0 %v770
        %898 = vmatpush1.bf16.msra.mxu0 %v769
        %899 = vmatprep.subr.bf16.mxu0 %v772
        %900 = vmatpush1.bf16.msra.mxu0 %v771
        %901 = vmatprep.subr.bf16.mxu0 %v774
        %902 = vmatpush1.bf16.msra.mxu0 %v773
        %903 = vmatprep.subr.bf16.mxu0 %v776
        %904 = vmatpush1.bf16.msra.mxu0 %v775
        %905 = vmatprep.subr.bf16.mxu0 0
        %906 = vmatpush1.bf16.msra.mxu0 0
        %907 = vmatprep.subr.bf16.mxu0 0
        %908 = vmatpush1.bf16.msra.mxu0 0
        %909 = vmatprep.subr.bf16.mxu0 0
        %910 = vmatpush1.bf16.msra.mxu0 0
        %911 = vmatprep.subr.bf16.mxu0 0
        %912 = vmatpush1.bf16.msra.mxu0 0
        %913 = vmatprep.subr.bf16.mxu0 0
        %914 = vmatpush1.bf16.msra.mxu0 0
        %915 = vmatprep.subr.bf16.mxu0 0
        %916 = vmatpush1.bf16.msra.mxu0 0
        %917 = vmatprep.subr.bf16.mxu0 0
        %918 = vmatpush1.bf16.msra.mxu0 0
        %919 = vmatprep.subr.bf16.mxu0 0
        %920 = vmatpush1.bf16.msra.mxu0 0
        %921 = vmatprep.mubr.bf16.mxu0 0
        %922 = vmatmul.mubr.bf16.gmra.mrb[0].mxu0 %v653
        %v923 = vpop.f32.mrb[0].mxu0
        %v924 = vadd.f32 0.0, %v923
        %v925 = vpop.f32.mrb[0].mxu0
        %v926 = vadd.f32 0.0, %v925
        %v927 = vpop.f32.mrb[0].mxu0
        %v928 = vpop.f32.mrb[0].mxu0
        %929 = vdwg.mxu0
        %930 = vmatprep.subr.bf16.mxu0 %v874
        %931 = vmatpush1.bf16.msra.mxu0 %v873
        %932 = vmatprep.subr.bf16.mxu0 %v876
        %933 = vmatpush1.bf16.msra.mxu0 %v875
        %934 = vmatprep.subr.bf16.mxu0 %v878
        %935 = vmatpush1.bf16.msra.mxu0 %v877
        %936 = vmatprep.subr.bf16.mxu0 %v880
        %937 = vmatpush1.bf16.msra.mxu0 %v879
        %938 = vmatprep.subr.bf16.mxu0 %v882
        %939 = vmatpush1.bf16.msra.mxu0 %v881
        %940 = vmatprep.subr.bf16.mxu0 %v884
        %941 = vmatpush1.bf16.msra.mxu0 %v883
        %942 = vmatprep.subr.bf16.mxu0 %v886
        %943 = vmatpush1.bf16.msra.mxu0 %v885
        %944 = vmatprep.subr.bf16.mxu0 %v888
        %945 = vmatpush1.bf16.msra.mxu0 %v887
        %946 = vmatprep.subr.bf16.mxu0 0
        %947 = vmatpush1.bf16.msra.mxu0 0
        %948 = vmatprep.subr.bf16.mxu0 0
        %949 = vmatpush1.bf16.msra.mxu0 0
        %950 = vmatprep.subr.bf16.mxu0 0
        %951 = vmatpush1.bf16.msra.mxu0 0
        %952 = vmatprep.subr.bf16.mxu0 0
        %953 = vmatpush1.bf16.msra.mxu0 0
        %954 = vmatprep.subr.bf16.mxu0 0
        %955 = vmatpush1.bf16.msra.mxu0 0
        %956 = vmatprep.subr.bf16.mxu0 0
        %957 = vmatpush1.bf16.msra.mxu0 0
        %958 = vmatprep.subr.bf16.mxu0 0
        %959 = vmatpush1.bf16.msra.mxu0 0
        %960 = vmatprep.subr.bf16.mxu0 0
        %961 = vmatpush1.bf16.msra.mxu0 0
        %962 = vmatprep.mubr.bf16.mxu0 0
        %963 = vmatmul.mubr.bf16.gmra.mrb[0].mxu0 %v653
        %v964 = vpop.f32.mrb[0].mxu0
        %v965 = vadd.f32 0.0, %v964
        %v966 = vpop.f32.mrb[0].mxu0
        %v967 = vadd.f32 0.0, %v966
        %v968 = vpop.f32.mrb[0].mxu0
        %v969 = vpop.f32.mrb[0].mxu0
        %970 = vdwg.mxu0
        %v972 = vlaneseq
        %v973 = vshrl.u32 %v972, 7
        %v974 = vsub.s32 0, %v973
        %v975 = vrot.slane %v655, %v974
        %v976 = vlaneseq
        %v977 = vshrl.u32 %v976, 7
        %v978 = vsub.s32 2, %v977
        %v979 = vrot.slane %v655, %v978
        %v982 = vlaneseq
        %v983 = vshrl.u32 %v982, 7
        %v984 = vsub.s32 0, %v983
        %v985 = vrot.slane %v975, %v984
        %v986 = vlaneseq
        %v987 = vshrl.u32 %v986, 7
        %v988 = vsub.s32 0, %v987
        %v989 = vrot.slane %v979, %v988
        %v990 = vmul.f32 %v924, %v985
        %v991 = vmul.f32 %v926, %v989
        %v992 = vadd.f32 %v990, 0.0
        %v993 = vadd.f32 %v991, 0.0
        %v995 = vlaneseq
        %v996 = vshrl.u32 %v995, 7
        %v997 = vsub.s32 0, %v996
        %v998 = vrot.slane %v659, %v997
        %v999 = vlaneseq
        %v1000 = vshrl.u32 %v999, 7
        %v1001 = vsub.s32 2, %v1000
        %v1002 = vrot.slane %v659, %v1001
        %v1005 = vlaneseq
        %v1006 = vshrl.u32 %v1005, 7
        %v1007 = vsub.s32 0, %v1006
        %v1008 = vrot.slane %v998, %v1007
        %v1009 = vlaneseq
        %v1010 = vshrl.u32 %v1009, 7
        %v1011 = vsub.s32 0, %v1010
        %v1012 = vrot.slane %v1002, %v1011
        %v1013 = vmul.f32 %v664, %v1008
        %v1014 = vmul.f32 %v664, %v1012
        %v1015 = vsub.f32 %v992, %v1013
        %v1016 = vsub.f32 %v993, %v1014
        %v1018 = vlaneseq
        %v1019 = vshrl.u32 %v1018, 7
        %v1020 = vsub.s32 0, %v1019
        %v1021 = vrot.slane %v656, %v1020
        %v1022 = vlaneseq
        %v1023 = vshrl.u32 %v1022, 7
        %v1024 = vsub.s32 2, %v1023
        %v1025 = vrot.slane %v656, %v1024
        %v1028 = vlaneseq
        %v1029 = vshrl.u32 %v1028, 7
        %v1030 = vsub.s32 0, %v1029
        %v1031 = vrot.slane %v1021, %v1030
        %v1032 = vlaneseq
        %v1033 = vshrl.u32 %v1032, 7
        %v1034 = vsub.s32 0, %v1033
        %v1035 = vrot.slane %v1025, %v1034
        %v1036 = vmul.f32 %v965, %v1031
        %v1037 = vmul.f32 %v967, %v1035
        %v1038 = vadd.f32 %v1036, 0.0
        %v1039 = vadd.f32 %v1037, 0.0
        %v1041 = vlaneseq
        %v1042 = vshrl.u32 %v1041, 7
        %v1043 = vsub.s32 0, %v1042
        %v1044 = vrot.slane %v662, %v1043
        %v1045 = vlaneseq
        %v1046 = vshrl.u32 %v1045, 7
        %v1047 = vsub.s32 2, %v1046
        %v1048 = vrot.slane %v662, %v1047
        %v1051 = vlaneseq
        %v1052 = vshrl.u32 %v1051, 7
        %v1053 = vsub.s32 0, %v1052
        %v1054 = vrot.slane %v1044, %v1053
        %v1055 = vlaneseq
        %v1056 = vshrl.u32 %v1055, 7
        %v1057 = vsub.s32 0, %v1056
        %v1058 = vrot.slane %v1048, %v1057
        %v1059 = vmul.f32 %v664, %v1054
        %v1060 = vmul.f32 %v664, %v1058
        %v1061 = vsub.f32 %v1038, %v1059
        %v1062 = vsub.f32 %v1039, %v1060
        %1063 = vadd.xlane.f32.xlu0 %v652
        %v1064 = vpop.xlane.xlu0 %1063
        %v1065 = vld [vmem:[%s509 + $0x20] sm:$0xff]
        %v1066 = vld [vmem:[%s509 + $0x28] sm:$0xff]
        %v1067 = vld [vmem:[%s509 + $0x30] sm:$0xff]
        %v1068 = vld [vmem:[%s509 + $0x38] sm:$0xff]
        %v1069 = vand.u32 %v1065, 15
        %v1070 = vand.u32 %v1066, 15
        %v1071 = vand.u32 %v1067, 15
        %v1072 = vand.u32 %v1068, 15
        %v1073 = vshra.s32 %v1065, 4
        %v1074 = vshra.s32 %v1066, 4
        %v1075 = vshra.s32 %v1067, 4
        %v1076 = vshra.s32 %v1068, 4
        %v1077 = vand.u32 %v1073, 15
        %v1078 = vand.u32 %v1074, 15
        %v1079 = vand.u32 %v1075, 15
        %v1080 = vand.u32 %v1076, 15
        %v1081 = vshra.s32 %v1065, 8
        %v1082 = vshra.s32 %v1066, 8
        %v1083 = vshra.s32 %v1067, 8
        %v1084 = vshra.s32 %v1068, 8
        %v1085 = vand.u32 %v1081, 15
        %v1086 = vand.u32 %v1082, 15
        %v1087 = vand.u32 %v1083, 15
        %v1088 = vand.u32 %v1084, 15
        %v1089 = vshra.s32 %v1065, 12
        %v1090 = vshra.s32 %v1066, 12
        %v1091 = vshra.s32 %v1067, 12
        %v1092 = vshra.s32 %v1068, 12
        %v1093 = vand.u32 %v1089, 15
        %v1094 = vand.u32 %v1090, 15
        %v1095 = vand.u32 %v1091, 15
        %v1096 = vand.u32 %v1092, 15
        %v1097 = vshra.s32 %v1065, 16
        %v1098 = vshra.s32 %v1066, 16
        %v1099 = vshra.s32 %v1067, 16
        %v1100 = vshra.s32 %v1068, 16
        %v1101 = vand.u32 %v1097, 15
        %v1102 = vand.u32 %v1098, 15
        %v1103 = vand.u32 %v1099, 15
        %v1104 = vand.u32 %v1100, 15
        %v1105 = vshra.s32 %v1065, 20
        %v1106 = vshra.s32 %v1066, 20
        %v1107 = vshra.s32 %v1067, 20
        %v1108 = vshra.s32 %v1068, 20
        %v1109 = vand.u32 %v1105, 15
        %v1110 = vand.u32 %v1106, 15
        %v1111 = vand.u32 %v1107, 15
        %v1112 = vand.u32 %v1108, 15
        %v1113 = vshra.s32 %v1065, 24
        %v1114 = vshra.s32 %v1066, 24
        %v1115 = vshra.s32 %v1067, 24
        %v1116 = vshra.s32 %v1068, 24
        %v1117 = vand.u32 %v1113, 15
        %v1118 = vand.u32 %v1114, 15
        %v1119 = vand.u32 %v1115, 15
        %v1120 = vand.u32 %v1116, 15
        %v1121 = vshra.s32 %v1065, 28
        %v1122 = vshra.s32 %v1066, 28
        %v1123 = vshra.s32 %v1067, 28
        %v1124 = vshra.s32 %v1068, 28
        %v1125 = vand.u32 %v1121, 15
        %v1126 = vand.u32 %v1122, 15
        %v1127 = vand.u32 %v1123, 15
        %v1128 = vand.u32 %v1124, 15
        %v1129 = vcvt.s32.f32 %v1069
        %v1130 = vcvt.s32.f32 %v1070
        %v1131 = vcvt.s32.f32 %v1071
        %v1132 = vcvt.s32.f32 %v1072
        %v1133 = vcvt.s32.f32 %v1077
        %v1134 = vcvt.s32.f32 %v1078
        %v1135 = vcvt.s32.f32 %v1079
        %v1136 = vcvt.s32.f32 %v1080
        %v1137 = vcvt.s32.f32 %v1085
        %v1138 = vcvt.s32.f32 %v1086
        %v1139 = vcvt.s32.f32 %v1087
        %v1140 = vcvt.s32.f32 %v1088
        %v1141 = vcvt.s32.f32 %v1093
        %v1142 = vcvt.s32.f32 %v1094
        %v1143 = vcvt.s32.f32 %v1095
        %v1144 = vcvt.s32.f32 %v1096
        %v1145 = vcvt.s32.f32 %v1101
        %v1146 = vcvt.s32.f32 %v1102
        %v1147 = vcvt.s32.f32 %v1103
        %v1148 = vcvt.s32.f32 %v1104
        %v1149 = vcvt.s32.f32 %v1109
        %v1150 = vcvt.s32.f32 %v1110
        %v1151 = vcvt.s32.f32 %v1111
        %v1152 = vcvt.s32.f32 %v1112
        %v1153 = vcvt.s32.f32 %v1117
        %v1154 = vcvt.s32.f32 %v1118
        %v1155 = vcvt.s32.f32 %v1119
        %v1156 = vcvt.s32.f32 %v1120
        %v1157 = vcvt.s32.f32 %v1125
        %v1158 = vcvt.s32.f32 %v1126
        %v1159 = vcvt.s32.f32 %v1127
        %v1160 = vcvt.s32.f32 %v1128
        %v1161 = vpack.c.bf16 %v1131, %v1129
        %v1162 = vpack.c.bf16 %v1132, %v1130
        %v1163 = vpack.c.bf16 %v1135, %v1133
        %v1164 = vpack.c.bf16 %v1136, %v1134
        %v1165 = vpack.c.bf16 %v1139, %v1137
        %v1166 = vpack.c.bf16 %v1140, %v1138
        %v1167 = vpack.c.bf16 %v1143, %v1141
        %v1168 = vpack.c.bf16 %v1144, %v1142
        %v1169 = vpack.c.bf16 %v1147, %v1145
        %v1170 = vpack.c.bf16 %v1148, %v1146
        %v1171 = vpack.c.bf16 %v1151, %v1149
        %v1172 = vpack.c.bf16 %v1152, %v1150
        %v1173 = vpack.c.bf16 %v1155, %v1153
        %v1174 = vpack.c.bf16 %v1156, %v1154
        %v1175 = vpack.c.bf16 %v1159, %v1157
        %v1176 = vpack.c.bf16 %v1160, %v1158
        %v1177 = vld [vmem:[%s527 + $0x20] sm:$0xff]
        %v1178 = vld [vmem:[%s527 + $0x28] sm:$0xff]
        %v1179 = vld [vmem:[%s527 + $0x30] sm:$0xff]
        %v1180 = vld [vmem:[%s527 + $0x38] sm:$0xff]
        %v1181 = vand.u32 %v1177, 15
        %v1182 = vand.u32 %v1178, 15
        %v1183 = vand.u32 %v1179, 15
        %v1184 = vand.u32 %v1180, 15
        %v1185 = vshra.s32 %v1177, 4
        %v1186 = vshra.s32 %v1178, 4
        %v1187 = vshra.s32 %v1179, 4
        %v1188 = vshra.s32 %v1180, 4
        %v1189 = vand.u32 %v1185, 15
        %v1190 = vand.u32 %v1186, 15
        %v1191 = vand.u32 %v1187, 15
        %v1192 = vand.u32 %v1188, 15
        %v1193 = vshra.s32 %v1177, 8
        %v1194 = vshra.s32 %v1178, 8
        %v1195 = vshra.s32 %v1179, 8
        %v1196 = vshra.s32 %v1180, 8
        %v1197 = vand.u32 %v1193, 15
        %v1198 = vand.u32 %v1194, 15
        %v1199 = vand.u32 %v1195, 15
        %v1200 = vand.u32 %v1196, 15
        %v1201 = vshra.s32 %v1177, 12
        %v1202 = vshra.s32 %v1178, 12
        %v1203 = vshra.s32 %v1179, 12
        %v1204 = vshra.s32 %v1180, 12
        %v1205 = vand.u32 %v1201, 15
        %v1206 = vand.u32 %v1202, 15
        %v1207 = vand.u32 %v1203, 15
        %v1208 = vand.u32 %v1204, 15
        %v1209 = vshra.s32 %v1177, 16
        %v1210 = vshra.s32 %v1178, 16
        %v1211 = vshra.s32 %v1179, 16
        %v1212 = vshra.s32 %v1180, 16
        %v1213 = vand.u32 %v1209, 15
        %v1214 = vand.u32 %v1210, 15
        %v1215 = vand.u32 %v1211, 15
        %v1216 = vand.u32 %v1212, 15
        %v1217 = vshra.s32 %v1177, 20
        %v1218 = vshra.s32 %v1178, 20
        %v1219 = vshra.s32 %v1179, 20
        %v1220 = vshra.s32 %v1180, 20
        %v1221 = vand.u32 %v1217, 15
        %v1222 = vand.u32 %v1218, 15
        %v1223 = vand.u32 %v1219, 15
        %v1224 = vand.u32 %v1220, 15
        %v1225 = vshra.s32 %v1177, 24
        %v1226 = vshra.s32 %v1178, 24
        %v1227 = vshra.s32 %v1179, 24
        %v1228 = vshra.s32 %v1180, 24
        %v1229 = vand.u32 %v1225, 15
        %v1230 = vand.u32 %v1226, 15
        %v1231 = vand.u32 %v1227, 15
        %v1232 = vand.u32 %v1228, 15
        %v1233 = vshra.s32 %v1177, 28
        %v1234 = vshra.s32 %v1178, 28
        %v1235 = vshra.s32 %v1179, 28
        %v1236 = vshra.s32 %v1180, 28
        %v1237 = vand.u32 %v1233, 15
        %v1238 = vand.u32 %v1234, 15
        %v1239 = vand.u32 %v1235, 15
        %v1240 = vand.u32 %v1236, 15
        %v1241 = vcvt.s32.f32 %v1181
        %v1242 = vcvt.s32.f32 %v1182
        %v1243 = vcvt.s32.f32 %v1183
        %v1244 = vcvt.s32.f32 %v1184
        %v1245 = vcvt.s32.f32 %v1189
        %v1246 = vcvt.s32.f32 %v1190
        %v1247 = vcvt.s32.f32 %v1191
        %v1248 = vcvt.s32.f32 %v1192
        %v1249 = vcvt.s32.f32 %v1197
        %v1250 = vcvt.s32.f32 %v1198
        %v1251 = vcvt.s32.f32 %v1199
        %v1252 = vcvt.s32.f32 %v1200
        %v1253 = vcvt.s32.f32 %v1205
        %v1254 = vcvt.s32.f32 %v1206
        %v1255 = vcvt.s32.f32 %v1207
        %v1256 = vcvt.s32.f32 %v1208
        %v1257 = vcvt.s32.f32 %v1213
        %v1258 = vcvt.s32.f32 %v1214
        %v1259 = vcvt.s32.f32 %v1215
        %v1260 = vcvt.s32.f32 %v1216
        %v1261 = vcvt.s32.f32 %v1221
        %v1262 = vcvt.s32.f32 %v1222
        %v1263 = vcvt.s32.f32 %v1223
        %v1264 = vcvt.s32.f32 %v1224
        %v1265 = vcvt.s32.f32 %v1229
        %v1266 = vcvt.s32.f32 %v1230
        %v1267 = vcvt.s32.f32 %v1231
        %v1268 = vcvt.s32.f32 %v1232
        %v1269 = vcvt.s32.f32 %v1237
        %v1270 = vcvt.s32.f32 %v1238
        %v1271 = vcvt.s32.f32 %v1239
        %v1272 = vcvt.s32.f32 %v1240
        %v1273 = vpack.c.bf16 %v1243, %v1241
        %v1274 = vpack.c.bf16 %v1244, %v1242
        %v1275 = vpack.c.bf16 %v1247, %v1245
        %v1276 = vpack.c.bf16 %v1248, %v1246
        %v1277 = vpack.c.bf16 %v1251, %v1249
        %v1278 = vpack.c.bf16 %v1252, %v1250
        %v1279 = vpack.c.bf16 %v1255, %v1253
        %v1280 = vpack.c.bf16 %v1256, %v1254
        %v1281 = vpack.c.bf16 %v1259, %v1257
        %v1282 = vpack.c.bf16 %v1260, %v1258
        %v1283 = vpack.c.bf16 %v1263, %v1261
        %v1284 = vpack.c.bf16 %v1264, %v1262
        %v1285 = vpack.c.bf16 %v1267, %v1265
        %v1286 = vpack.c.bf16 %v1268, %v1266
        %v1287 = vpack.c.bf16 %v1271, %v1269
        %v1288 = vpack.c.bf16 %v1272, %v1270
        %1289 = vmatprep.subr.bf16.mxu0 %v1162
        %1290 = vmatpush1.bf16.msra.mxu0 %v1161
        %1291 = vmatprep.subr.bf16.mxu0 %v1164
        %1292 = vmatpush1.bf16.msra.mxu0 %v1163
        %1293 = vmatprep.subr.bf16.mxu0 %v1166
        %1294 = vmatpush1.bf16.msra.mxu0 %v1165
        %1295 = vmatprep.subr.bf16.mxu0 %v1168
        %1296 = vmatpush1.bf16.msra.mxu0 %v1167
        %1297 = vmatprep.subr.bf16.mxu0 %v1170
        %1298 = vmatpush1.bf16.msra.mxu0 %v1169
        %1299 = vmatprep.subr.bf16.mxu0 %v1172
        %1300 = vmatpush1.bf16.msra.mxu0 %v1171
        %1301 = vmatprep.subr.bf16.mxu0 %v1174
        %1302 = vmatpush1.bf16.msra.mxu0 %v1173
        %1303 = vmatprep.subr.bf16.mxu0 %v1176
        %1304 = vmatpush1.bf16.msra.mxu0 %v1175
        %1305 = vmatprep.subr.bf16.mxu0 0
        %1306 = vmatpush1.bf16.msra.mxu0 0
        %1307 = vmatprep.subr.bf16.mxu0 0
        %1308 = vmatpush1.bf16.msra.mxu0 0
        %1309 = vmatprep.subr.bf16.mxu0 0
        %1310 = vmatpush1.bf16.msra.mxu0 0
        %1311 = vmatprep.subr.bf16.mxu0 0
        %1312 = vmatpush1.bf16.msra.mxu0 0
        %1313 = vmatprep.subr.bf16.mxu0 0
        %1314 = vmatpush1.bf16.msra.mxu0 0
        %1315 = vmatprep.subr.bf16.mxu0 0
        %1316 = vmatpush1.bf16.msra.mxu0 0
        %1317 = vmatprep.subr.bf16.mxu0 0
        %1318 = vmatpush1.bf16.msra.mxu0 0
        %1319 = vmatprep.subr.bf16.mxu0 0
        %1320 = vmatpush1.bf16.msra.mxu0 0
        %1321 = vmatprep.mubr.bf16.mxu0 0
        %1322 = vmatmul.mubr.bf16.gmra.mrb[0].mxu0 %v654
        %v1323 = vpop.f32.mrb[0].mxu0
        %v1324 = vadd.f32 0.0, %v1323
        %v1325 = vpop.f32.mrb[0].mxu0
        %v1326 = vadd.f32 0.0, %v1325
        %v1327 = vpop.f32.mrb[0].mxu0
        %v1328 = vpop.f32.mrb[0].mxu0
        %1329 = vdwg.mxu0
        %1330 = vmatprep.subr.bf16.mxu0 %v1274
        %1331 = vmatpush1.bf16.msra.mxu0 %v1273
        %1332 = vmatprep.subr.bf16.mxu0 %v1276
        %1333 = vmatpush1.bf16.msra.mxu0 %v1275
        %1334 = vmatprep.subr.bf16.mxu0 %v1278
        %1335 = vmatpush1.bf16.msra.mxu0 %v1277
        %1336 = vmatprep.subr.bf16.mxu0 %v1280
        %1337 = vmatpush1.bf16.msra.mxu0 %v1279
        %1338 = vmatprep.subr.bf16.mxu0 %v1282
        %1339 = vmatpush1.bf16.msra.mxu0 %v1281
        %1340 = vmatprep.subr.bf16.mxu0 %v1284
        %1341 = vmatpush1.bf16.msra.mxu0 %v1283
        %1342 = vmatprep.subr.bf16.mxu0 %v1286
        %1343 = vmatpush1.bf16.msra.mxu0 %v1285
        %1344 = vmatprep.subr.bf16.mxu0 %v1288
        %1345 = vmatpush1.bf16.msra.mxu0 %v1287
        %1346 = vmatprep.subr.bf16.mxu0 0
        %1347 = vmatpush1.bf16.msra.mxu0 0
        %1348 = vmatprep.subr.bf16.mxu0 0
        %1349 = vmatpush1.bf16.msra.mxu0 0
        %1350 = vmatprep.subr.bf16.mxu0 0
        %1351 = vmatpush1.bf16.msra.mxu0 0
        %1352 = vmatprep.subr.bf16.mxu0 0
        %1353 = vmatpush1.bf16.msra.mxu0 0
        %1354 = vmatprep.subr.bf16.mxu0 0
        %1355 = vmatpush1.bf16.msra.mxu0 0
        %1356 = vmatprep.subr.bf16.mxu0 0
        %1357 = vmatpush1.bf16.msra.mxu0 0
        %1358 = vmatprep.subr.bf16.mxu0 0
        %1359 = vmatpush1.bf16.msra.mxu0 0
        %1360 = vmatprep.subr.bf16.mxu0 0
        %1361 = vmatpush1.bf16.msra.mxu0 0
        %1362 = vmatprep.mubr.bf16.mxu0 0
        %1363 = vmatmul.mubr.bf16.gmra.mrb[0].mxu0 %v654
        %v1364 = vpop.f32.mrb[0].mxu0
        %v1365 = vadd.f32 0.0, %v1364
        %v1366 = vpop.f32.mrb[0].mxu0
        %v1367 = vadd.f32 0.0, %v1366
        %v1368 = vpop.f32.mrb[0].mxu0
        %v1369 = vpop.f32.mrb[0].mxu0
        %1370 = vdwg.mxu0
        %v1371 = vlaneseq
        %v1372 = vshrl.u32 %v1371, 7
        %v1373 = vsub.s32 1, %v1372
        %v1374 = vrot.slane %v655, %v1373
        %v1375 = vlaneseq
        %v1376 = vshrl.u32 %v1375, 7
        %v1377 = vsub.s32 3, %v1376
        %v1378 = vrot.slane %v655, %v1377
        %v1381 = vlaneseq
        %v1382 = vshrl.u32 %v1381, 7
        %v1383 = vsub.s32 1, %v1382
        %v1384 = vrot.slane %v1374, %v1383
        %v1385 = vlaneseq
        %v1386 = vshrl.u32 %v1385, 7
        %v1387 = vsub.s32 1, %v1386
        %v1388 = vrot.slane %v1378, %v1387
        %v1389 = vmul.f32 %v1324, %v1384
        %v1390 = vmul.f32 %v1326, %v1388
        %v1391 = vadd.f32 %v1015, %v1389
        %v1392 = vadd.f32 %v1016, %v1390
        %v1393 = vlaneseq
        %v1394 = vshrl.u32 %v1393, 7
        %v1395 = vsub.s32 1, %v1394
        %v1396 = vrot.slane %v659, %v1395
        %v1397 = vlaneseq
        %v1398 = vshrl.u32 %v1397, 7
        %v1399 = vsub.s32 3, %v1398
        %v1400 = vrot.slane %v659, %v1399
        %v1403 = vlaneseq
        %v1404 = vshrl.u32 %v1403, 7
        %v1405 = vsub.s32 1, %v1404
        %v1406 = vrot.slane %v1396, %v1405
        %v1407 = vlaneseq
        %v1408 = vshrl.u32 %v1407, 7
        %v1409 = vsub.s32 1, %v1408
        %v1410 = vrot.slane %v1400, %v1409
        %v1411 = vmul.f32 %v1064, %v1406
        %v1412 = vmul.f32 %v1064, %v1410
        %v1413 = vsub.f32 %v1391, %v1411
        %v1414 = vsub.f32 %v1392, %v1412
        %v1415 = vlaneseq
        %v1416 = vshrl.u32 %v1415, 7
        %v1417 = vsub.s32 1, %v1416
        %v1418 = vrot.slane %v656, %v1417
        %v1419 = vlaneseq
        %v1420 = vshrl.u32 %v1419, 7
        %v1421 = vsub.s32 3, %v1420
        %v1422 = vrot.slane %v656, %v1421
        %v1425 = vlaneseq
        %v1426 = vshrl.u32 %v1425, 7
        %v1427 = vsub.s32 1, %v1426
        %v1428 = vrot.slane %v1418, %v1427
        %v1429 = vlaneseq
        %v1430 = vshrl.u32 %v1429, 7
        %v1431 = vsub.s32 1, %v1430
        %v1432 = vrot.slane %v1422, %v1431
        %v1433 = vmul.f32 %v1365, %v1428
        %v1434 = vmul.f32 %v1367, %v1432
        %v1435 = vadd.f32 %v1061, %v1433
        %v1436 = vadd.f32 %v1062, %v1434
        %v1437 = vlaneseq
        %v1438 = vshrl.u32 %v1437, 7
        %v1439 = vsub.s32 1, %v1438
        %v1440 = vrot.slane %v662, %v1439
        %v1441 = vlaneseq
        %v1442 = vshrl.u32 %v1441, 7
        %v1443 = vsub.s32 3, %v1442
        %v1444 = vrot.slane %v662, %v1443
        %v1447 = vlaneseq
        %v1448 = vshrl.u32 %v1447, 7
        %v1449 = vsub.s32 1, %v1448
        %v1450 = vrot.slane %v1440, %v1449
        %v1451 = vlaneseq
        %v1452 = vshrl.u32 %v1451, 7
        %v1453 = vsub.s32 1, %v1452
        %v1454 = vrot.slane %v1444, %v1453
        %v1455 = vmul.f32 %v1064, %v1450
        %v1456 = vmul.f32 %v1064, %v1454
        %v1457 = vsub.f32 %v1435, %v1455
        %v1458 = vsub.f32 %v1436, %v1456
        %v1459 = vxor.u32 %v1413, 2147483648
        %v1460 = vxor.u32 %v1414, 2147483648
        %v1461 = vmul.f32 %v1459, 1.442695
        %v1462 = vpow.pop %v1461
        %v1463 = vmul.f32 %v1460, 1.442695
        %v1464 = vpow.pop %v1463
        %v1465 = vadd.f32 %v1462, 1.0
        %v1466 = vadd.f32 %v1464, 1.0
        %v1467 = vrcp.pop %v1465
        %v1468 = vmul.f32 1.0, %v1467
        %v1469 = vrcp.pop %v1466
        %v1470 = vmul.f32 1.0, %v1469
        %v1471 = vmul.f32 %v1413, %v1468
        %v1472 = vmul.f32 %v1414, %v1470
        %v1473 = vmul.f32 %v1471, %v1457
        %v1474 = vmul.f32 %v1472, %v1458
        %v1475 = vpack.c.bf16 %v1473, %v1473
        %v1476 = vpack.c.bf16 %v1474, %v1474
        %v1477 = vld [vmem:[%s638] sm:$0xf]
        %v1478 = vld [vmem:[%s643] sm:$0xf]
        %v1479 = vcvt.s32.f32 %v1478
        %v1480 = vmul.f32 %v1479, %v1477
        %1481 = vadd.xlane.f32.xlu0 %v1473
        %v1482 = vpop.xlane.xlu0 %1481
        %v1483 = vld [vmem:[%s545] sm:$0xff]
        %v1484 = vld [vmem:[%s545 + $0x8] sm:$0xff]
        %v1485 = vld [vmem:[%s545 + $0x10] sm:$0xff]
        %v1486 = vld [vmem:[%s545 + $0x18] sm:$0xff]
        %v1487 = vand.u32 %v1483, 15
        %v1488 = vand.u32 %v1484, 15
        %v1489 = vand.u32 %v1485, 15
        %v1490 = vand.u32 %v1486, 15
        %v1491 = vshra.s32 %v1483, 4
        %v1492 = vshra.s32 %v1484, 4
        %v1493 = vshra.s32 %v1485, 4
        %v1494 = vshra.s32 %v1486, 4
        %v1495 = vand.u32 %v1491, 15
        %v1496 = vand.u32 %v1492, 15
        %v1497 = vand.u32 %v1493, 15
        %v1498 = vand.u32 %v1494, 15
        %v1499 = vshra.s32 %v1483, 8
        %v1500 = vshra.s32 %v1484, 8
        %v1501 = vshra.s32 %v1485, 8
        %v1502 = vshra.s32 %v1486, 8
        %v1503 = vand.u32 %v1499, 15
        %v1504 = vand.u32 %v1500, 15
        %v1505 = vand.u32 %v1501, 15
        %v1506 = vand.u32 %v1502, 15
        %v1507 = vshra.s32 %v1483, 12
        %v1508 = vshra.s32 %v1484, 12
        %v1509 = vshra.s32 %v1485, 12
        %v1510 = vshra.s32 %v1486, 12
        %v1511 = vand.u32 %v1507, 15
        %v1512 = vand.u32 %v1508, 15
        %v1513 = vand.u32 %v1509, 15
        %v1514 = vand.u32 %v1510, 15
        %v1515 = vshra.s32 %v1483, 16
        %v1516 = vshra.s32 %v1484, 16
        %v1517 = vshra.s32 %v1485, 16
        %v1518 = vshra.s32 %v1486, 16
        %v1519 = vand.u32 %v1515, 15
        %v1520 = vand.u32 %v1516, 15
        %v1521 = vand.u32 %v1517, 15
        %v1522 = vand.u32 %v1518, 15
        %v1523 = vshra.s32 %v1483, 20
        %v1524 = vshra.s32 %v1484, 20
        %v1525 = vshra.s32 %v1485, 20
        %v1526 = vshra.s32 %v1486, 20
        %v1527 = vand.u32 %v1523, 15
        %v1528 = vand.u32 %v1524, 15
        %v1529 = vand.u32 %v1525, 15
        %v1530 = vand.u32 %v1526, 15
        %v1531 = vshra.s32 %v1483, 24
        %v1532 = vshra.s32 %v1484, 24
        %v1533 = vshra.s32 %v1485, 24
        %v1534 = vshra.s32 %v1486, 24
        %v1535 = vand.u32 %v1531, 15
        %v1536 = vand.u32 %v1532, 15
        %v1537 = vand.u32 %v1533, 15
        %v1538 = vand.u32 %v1534, 15
        %v1539 = vshra.s32 %v1483, 28
        %v1540 = vshra.s32 %v1484, 28
        %v1541 = vshra.s32 %v1485, 28
        %v1542 = vshra.s32 %v1486, 28
        %v1543 = vand.u32 %v1539, 15
        %v1544 = vand.u32 %v1540, 15
        %v1545 = vand.u32 %v1541, 15
        %v1546 = vand.u32 %v1542, 15
        %v1547 = vcvt.s32.f32 %v1487
        %v1548 = vcvt.s32.f32 %v1488
        %v1549 = vcvt.s32.f32 %v1489
        %v1550 = vcvt.s32.f32 %v1490
        %v1551 = vcvt.s32.f32 %v1495
        %v1552 = vcvt.s32.f32 %v1496
        %v1553 = vcvt.s32.f32 %v1497
        %v1554 = vcvt.s32.f32 %v1498
        %v1555 = vcvt.s32.f32 %v1503
        %v1556 = vcvt.s32.f32 %v1504
        %v1557 = vcvt.s32.f32 %v1505
        %v1558 = vcvt.s32.f32 %v1506
        %v1559 = vcvt.s32.f32 %v1511
        %v1560 = vcvt.s32.f32 %v1512
        %v1561 = vcvt.s32.f32 %v1513
        %v1562 = vcvt.s32.f32 %v1514
        %v1563 = vcvt.s32.f32 %v1519
        %v1564 = vcvt.s32.f32 %v1520
        %v1565 = vcvt.s32.f32 %v1521
        %v1566 = vcvt.s32.f32 %v1522
        %v1567 = vcvt.s32.f32 %v1527
        %v1568 = vcvt.s32.f32 %v1528
        %v1569 = vcvt.s32.f32 %v1529
        %v1570 = vcvt.s32.f32 %v1530
        %v1571 = vcvt.s32.f32 %v1535
        %v1572 = vcvt.s32.f32 %v1536
        %v1573 = vcvt.s32.f32 %v1537
        %v1574 = vcvt.s32.f32 %v1538
        %v1575 = vcvt.s32.f32 %v1543
        %v1576 = vcvt.s32.f32 %v1544
        %v1577 = vcvt.s32.f32 %v1545
        %v1578 = vcvt.s32.f32 %v1546
        %v1579 = vpack.c.bf16 %v1549, %v1547
        %v1580 = vpack.c.bf16 %v1550, %v1548
        %v1581 = vpack.c.bf16 %v1553, %v1551
        %v1582 = vpack.c.bf16 %v1554, %v1552
        %v1583 = vpack.c.bf16 %v1557, %v1555
        %v1584 = vpack.c.bf16 %v1558, %v1556
        %v1585 = vpack.c.bf16 %v1561, %v1559
        %v1586 = vpack.c.bf16 %v1562, %v1560
        %v1587 = vpack.c.bf16 %v1565, %v1563
        %v1588 = vpack.c.bf16 %v1566, %v1564
        %v1589 = vpack.c.bf16 %v1569, %v1567
        %v1590 = vpack.c.bf16 %v1570, %v1568
        %v1591 = vpack.c.bf16 %v1573, %v1571
        %v1592 = vpack.c.bf16 %v1574, %v1572
        %v1593 = vpack.c.bf16 %v1577, %v1575
        %v1594 = vpack.c.bf16 %v1578, %v1576
        %1595 = vmatprep.subr.bf16.mxu0 %v1580
        %1596 = vmatpush1.bf16.msra.mxu0 %v1579
        %1597 = vmatprep.subr.bf16.mxu0 %v1582
        %1598 = vmatpush1.bf16.msra.mxu0 %v1581
        %1599 = vmatprep.subr.bf16.mxu0 %v1584
        %1600 = vmatpush1.bf16.msra.mxu0 %v1583
        %1601 = vmatprep.subr.bf16.mxu0 %v1586
        %1602 = vmatpush1.bf16.msra.mxu0 %v1585
        %1603 = vmatprep.subr.bf16.mxu0 %v1588
        %1604 = vmatpush1.bf16.msra.mxu0 %v1587
        %1605 = vmatprep.subr.bf16.mxu0 %v1590
        %1606 = vmatpush1.bf16.msra.mxu0 %v1589
        %1607 = vmatprep.subr.bf16.mxu0 %v1592
        %1608 = vmatpush1.bf16.msra.mxu0 %v1591
        %1609 = vmatprep.subr.bf16.mxu0 %v1594
        %1610 = vmatpush1.bf16.msra.mxu0 %v1593
        %1611 = vmatprep.subr.bf16.mxu0 0
        %1612 = vmatpush1.bf16.msra.mxu0 0
        %1613 = vmatprep.subr.bf16.mxu0 0
        %1614 = vmatpush1.bf16.msra.mxu0 0
        %1615 = vmatprep.subr.bf16.mxu0 0
        %1616 = vmatpush1.bf16.msra.mxu0 0
        %1617 = vmatprep.subr.bf16.mxu0 0
        %1618 = vmatpush1.bf16.msra.mxu0 0
        %1619 = vmatprep.subr.bf16.mxu0 0
        %1620 = vmatpush1.bf16.msra.mxu0 0
        %1621 = vmatprep.subr.bf16.mxu0 0
        %1622 = vmatpush1.bf16.msra.mxu0 0
        %1623 = vmatprep.subr.bf16.mxu0 0
        %1624 = vmatpush1.bf16.msra.mxu0 0
        %1625 = vmatprep.subr.bf16.mxu0 0
        %1626 = vmatpush1.bf16.msra.mxu0 0
        %1627 = vmatprep.mubr.bf16.mxu0 0
        %1628 = vmatmul.mubr.bf16.gmra.mrb[0].mxu0 %v1475
        %v1629 = vpop.f32.mrb[0].mxu0
        %v1630 = vadd.f32 0.0, %v1629
        %v1631 = vpop.f32.mrb[0].mxu0
        %v1632 = vadd.f32 0.0, %v1631
        %v1633 = vpop.f32.mrb[0].mxu0
        %v1634 = vpop.f32.mrb[0].mxu0
        %1635 = vdwg.mxu0
        %v1637 = vlaneseq
        %v1638 = vshrl.u32 %v1637, 7
        %v1639 = vsub.s32 0, %v1638
        %v1640 = vrot.slane %v1477, %v1639
        %v1641 = vlaneseq
        %v1642 = vshrl.u32 %v1641, 7
        %v1643 = vsub.s32 2, %v1642
        %v1644 = vrot.slane %v1477, %v1643
        %v1647 = vlaneseq
        %v1648 = vshrl.u32 %v1647, 7
        %v1649 = vsub.s32 0, %v1648
        %v1650 = vrot.slane %v1640, %v1649
        %v1651 = vlaneseq
        %v1652 = vshrl.u32 %v1651, 7
        %v1653 = vsub.s32 0, %v1652
        %v1654 = vrot.slane %v1644, %v1653
        %v1655 = vmul.f32 %v1630, %v1650
        %v1656 = vmul.f32 %v1632, %v1654
        %v1657 = vadd.f32 %v1655, 0.0
        %v1658 = vadd.f32 %v1656, 0.0
        %v1660 = vlaneseq
        %v1661 = vshrl.u32 %v1660, 7
        %v1662 = vsub.s32 0, %v1661
        %v1663 = vrot.slane %v1480, %v1662
        %v1664 = vlaneseq
        %v1665 = vshrl.u32 %v1664, 7
        %v1666 = vsub.s32 2, %v1665
        %v1667 = vrot.slane %v1480, %v1666
        %v1670 = vlaneseq
        %v1671 = vshrl.u32 %v1670, 7
        %v1672 = vsub.s32 0, %v1671
        %v1673 = vrot.slane %v1663, %v1672
        %v1674 = vlaneseq
        %v1675 = vshrl.u32 %v1674, 7
        %v1676 = vsub.s32 0, %v1675
        %v1677 = vrot.slane %v1667, %v1676
        %v1678 = vmul.f32 %v1482, %v1673
        %v1679 = vmul.f32 %v1482, %v1677
        %v1680 = vsub.f32 %v1657, %v1678
        %v1681 = vsub.f32 %v1658, %v1679
        %1682 = vadd.xlane.f32.xlu0 %v1474
        %v1683 = vpop.xlane.xlu0 %1682
        %v1684 = vld [vmem:[%s545 + $0x20] sm:$0xff]
        %v1685 = vld [vmem:[%s545 + $0x28] sm:$0xff]
        %v1686 = vld [vmem:[%s545 + $0x30] sm:$0xff]
        %v1687 = vld [vmem:[%s545 + $0x38] sm:$0xff]
        %v1688 = vand.u32 %v1684, 15
        %v1689 = vand.u32 %v1685, 15
        %v1690 = vand.u32 %v1686, 15
        %v1691 = vand.u32 %v1687, 15
        %v1692 = vshra.s32 %v1684, 4
        %v1693 = vshra.s32 %v1685, 4
        %v1694 = vshra.s32 %v1686, 4
        %v1695 = vshra.s32 %v1687, 4
        %v1696 = vand.u32 %v1692, 15
        %v1697 = vand.u32 %v1693, 15
        %v1698 = vand.u32 %v1694, 15
        %v1699 = vand.u32 %v1695, 15
        %v1700 = vshra.s32 %v1684, 8
        %v1701 = vshra.s32 %v1685, 8
        %v1702 = vshra.s32 %v1686, 8
        %v1703 = vshra.s32 %v1687, 8
        %v1704 = vand.u32 %v1700, 15
        %v1705 = vand.u32 %v1701, 15
        %v1706 = vand.u32 %v1702, 15
        %v1707 = vand.u32 %v1703, 15
        %v1708 = vshra.s32 %v1684, 12
        %v1709 = vshra.s32 %v1685, 12
        %v1710 = vshra.s32 %v1686, 12
        %v1711 = vshra.s32 %v1687, 12
        %v1712 = vand.u32 %v1708, 15
        %v1713 = vand.u32 %v1709, 15
        %v1714 = vand.u32 %v1710, 15
        %v1715 = vand.u32 %v1711, 15
        %v1716 = vshra.s32 %v1684, 16
        %v1717 = vshra.s32 %v1685, 16
        %v1718 = vshra.s32 %v1686, 16
        %v1719 = vshra.s32 %v1687, 16
        %v1720 = vand.u32 %v1716, 15
        %v1721 = vand.u32 %v1717, 15
        %v1722 = vand.u32 %v1718, 15
        %v1723 = vand.u32 %v1719, 15
        %v1724 = vshra.s32 %v1684, 20
        %v1725 = vshra.s32 %v1685, 20
        %v1726 = vshra.s32 %v1686, 20
        %v1727 = vshra.s32 %v1687, 20
        %v1728 = vand.u32 %v1724, 15
        %v1729 = vand.u32 %v1725, 15
        %v1730 = vand.u32 %v1726, 15
        %v1731 = vand.u32 %v1727, 15
        %v1732 = vshra.s32 %v1684, 24
        %v1733 = vshra.s32 %v1685, 24
        %v1734 = vshra.s32 %v1686, 24
        %v1735 = vshra.s32 %v1687, 24
        %v1736 = vand.u32 %v1732, 15
        %v1737 = vand.u32 %v1733, 15
        %v1738 = vand.u32 %v1734, 15
        %v1739 = vand.u32 %v1735, 15
        %v1740 = vshra.s32 %v1684, 28
        %v1741 = vshra.s32 %v1685, 28
        %v1742 = vshra.s32 %v1686, 28
        %v1743 = vshra.s32 %v1687, 28
        %v1744 = vand.u32 %v1740, 15
        %v1745 = vand.u32 %v1741, 15
        %v1746 = vand.u32 %v1742, 15
        %v1747 = vand.u32 %v1743, 15
        %v1748 = vcvt.s32.f32 %v1688
        %v1749 = vcvt.s32.f32 %v1689
        %v1750 = vcvt.s32.f32 %v1690
        %v1751 = vcvt.s32.f32 %v1691
        %v1752 = vcvt.s32.f32 %v1696
        %v1753 = vcvt.s32.f32 %v1697
        %v1754 = vcvt.s32.f32 %v1698
        %v1755 = vcvt.s32.f32 %v1699
        %v1756 = vcvt.s32.f32 %v1704
        %v1757 = vcvt.s32.f32 %v1705
        %v1758 = vcvt.s32.f32 %v1706
        %v1759 = vcvt.s32.f32 %v1707
        %v1760 = vcvt.s32.f32 %v1712
        %v1761 = vcvt.s32.f32 %v1713
        %v1762 = vcvt.s32.f32 %v1714
        %v1763 = vcvt.s32.f32 %v1715
        %v1764 = vcvt.s32.f32 %v1720
        %v1765 = vcvt.s32.f32 %v1721
        %v1766 = vcvt.s32.f32 %v1722
        %v1767 = vcvt.s32.f32 %v1723
        %v1768 = vcvt.s32.f32 %v1728
        %v1769 = vcvt.s32.f32 %v1729
        %v1770 = vcvt.s32.f32 %v1730
        %v1771 = vcvt.s32.f32 %v1731
        %v1772 = vcvt.s32.f32 %v1736
        %v1773 = vcvt.s32.f32 %v1737
        %v1774 = vcvt.s32.f32 %v1738
        %v1775 = vcvt.s32.f32 %v1739
        %v1776 = vcvt.s32.f32 %v1744
        %v1777 = vcvt.s32.f32 %v1745
        %v1778 = vcvt.s32.f32 %v1746
        %v1779 = vcvt.s32.f32 %v1747
        %v1780 = vpack.c.bf16 %v1750, %v1748
        %v1781 = vpack.c.bf16 %v1751, %v1749
        %v1782 = vpack.c.bf16 %v1754, %v1752
        %v1783 = vpack.c.bf16 %v1755, %v1753
        %v1784 = vpack.c.bf16 %v1758, %v1756
        %v1785 = vpack.c.bf16 %v1759, %v1757
        %v1786 = vpack.c.bf16 %v1762, %v1760
        %v1787 = vpack.c.bf16 %v1763, %v1761
        %v1788 = vpack.c.bf16 %v1766, %v1764
        %v1789 = vpack.c.bf16 %v1767, %v1765
        %v1790 = vpack.c.bf16 %v1770, %v1768
        %v1791 = vpack.c.bf16 %v1771, %v1769
        %v1792 = vpack.c.bf16 %v1774, %v1772
        %v1793 = vpack.c.bf16 %v1775, %v1773
        %v1794 = vpack.c.bf16 %v1778, %v1776
        %v1795 = vpack.c.bf16 %v1779, %v1777
        %1796 = vmatprep.subr.bf16.mxu0 %v1781
        %1797 = vmatpush1.bf16.msra.mxu0 %v1780
        %1798 = vmatprep.subr.bf16.mxu0 %v1783
        %1799 = vmatpush1.bf16.msra.mxu0 %v1782
        %1800 = vmatprep.subr.bf16.mxu0 %v1785
        %1801 = vmatpush1.bf16.msra.mxu0 %v1784
        %1802 = vmatprep.subr.bf16.mxu0 %v1787
        %1803 = vmatpush1.bf16.msra.mxu0 %v1786
        %1804 = vmatprep.subr.bf16.mxu0 %v1789
        %1805 = vmatpush1.bf16.msra.mxu0 %v1788
        %1806 = vmatprep.subr.bf16.mxu0 %v1791
        %1807 = vmatpush1.bf16.msra.mxu0 %v1790
        %1808 = vmatprep.subr.bf16.mxu0 %v1793
        %1809 = vmatpush1.bf16.msra.mxu0 %v1792
        %1810 = vmatprep.subr.bf16.mxu0 %v1795
        %1811 = vmatpush1.bf16.msra.mxu0 %v1794
        %1812 = vmatprep.subr.bf16.mxu0 0
        %1813 = vmatpush1.bf16.msra.mxu0 0
        %1814 = vmatprep.subr.bf16.mxu0 0
        %1815 = vmatpush1.bf16.msra.mxu0 0
        %1816 = vmatprep.subr.bf16.mxu0 0
        %1817 = vmatpush1.bf16.msra.mxu0 0
        %1818 = vmatprep.subr.bf16.mxu0 0
        %1819 = vmatpush1.bf16.msra.mxu0 0
        %1820 = vmatprep.subr.bf16.mxu0 0
        %1821 = vmatpush1.bf16.msra.mxu0 0
        %1822 = vmatprep.subr.bf16.mxu0 0
        %1823 = vmatpush1.bf16.msra.mxu0 0
        %1824 = vmatprep.subr.bf16.mxu0 0
        %1825 = vmatpush1.bf16.msra.mxu0 0
        %1826 = vmatprep.subr.bf16.mxu0 0
        %1827 = vmatpush1.bf16.msra.mxu0 0
        %1828 = vmatprep.mubr.bf16.mxu0 0
        %1829 = vmatmul.mubr.bf16.gmra.mrb[0].mxu0 %v1476
        %v1830 = vpop.f32.mrb[0].mxu0
        %v1831 = vadd.f32 0.0, %v1830
        %v1832 = vpop.f32.mrb[0].mxu0
        %v1833 = vadd.f32 0.0, %v1832
        %v1834 = vpop.f32.mrb[0].mxu0
        %v1835 = vpop.f32.mrb[0].mxu0
        %1836 = vdwg.mxu0
        %v1837 = vlaneseq
        %v1838 = vshrl.u32 %v1837, 7
        %v1839 = vsub.s32 1, %v1838
        %v1840 = vrot.slane %v1477, %v1839
        %v1841 = vlaneseq
        %v1842 = vshrl.u32 %v1841, 7
        %v1843 = vsub.s32 3, %v1842
        %v1844 = vrot.slane %v1477, %v1843
        %v1847 = vlaneseq
        %v1848 = vshrl.u32 %v1847, 7
        %v1849 = vsub.s32 1, %v1848
        %v1850 = vrot.slane %v1840, %v1849
        %v1851 = vlaneseq
        %v1852 = vshrl.u32 %v1851, 7
        %v1853 = vsub.s32 1, %v1852
        %v1854 = vrot.slane %v1844, %v1853
        %v1855 = vmul.f32 %v1831, %v1850
        %v1856 = vmul.f32 %v1833, %v1854
        %v1857 = vadd.f32 %v1680, %v1855
        %v1858 = vadd.f32 %v1681, %v1856
        %v1859 = vlaneseq
        %v1860 = vshrl.u32 %v1859, 7
        %v1861 = vsub.s32 1, %v1860
        %v1862 = vrot.slane %v1480, %v1861
        %v1863 = vlaneseq
        %v1864 = vshrl.u32 %v1863, 7
        %v1865 = vsub.s32 3, %v1864
        %v1866 = vrot.slane %v1480, %v1865
        %v1869 = vlaneseq
        %v1870 = vshrl.u32 %v1869, 7
        %v1871 = vsub.s32 1, %v1870
        %v1872 = vrot.slane %v1862, %v1871
        %v1873 = vlaneseq
        %v1874 = vshrl.u32 %v1873, 7
        %v1875 = vsub.s32 1, %v1874
        %v1876 = vrot.slane %v1866, %v1875
        %v1877 = vmul.f32 %v1683, %v1872
        %v1878 = vmul.f32 %v1683, %v1876
        %v1879 = vsub.f32 %v1857, %v1877
        %v1880 = vsub.f32 %v1858, %v1878
        %v1881 = vld [vmem:[#allocation2] sm:$0xff]
        %v1882 = vld [vmem:[#allocation2 + $0x8] sm:$0xff]
        %v1883 = vadd.f32 %v1881, %v1879
        %v1884 = vadd.f32 %v1882, %v1880
        %1885 = vst [vmem:[#allocation2] sm:$0xff] %v1883
        %1886 = vst [vmem:[#allocation2 + $0x8] sm:$0xff] %v1884
        %p1887 = scmp.eq.s32.totalorder %s37, 1
        // Predicated region
        $region89: #{tpu_custom_call.1} parent=59 // pred_check
          %p1888 = pneg %p1887
        $region90: #{tpu_custom_call.1} parent=59 // pred_check_branch
          %1890 = sbr.rel (%p1888) target = $region92
        $region91: #{tpu_custom_call.1} parent=59 // pred_region
          %v1891 = vld [vmem:[#allocation2] sm:$0xff]
          %v1892 = vld [vmem:[#allocation2 + $0x8] sm:$0xff]
          %1893 = vst [vmem:[#allocation14] sm:$0xff] %v1891
          %1894 = vst [vmem:[#allocation14 + $0x8] sm:$0xff] %v1892
        $region92: #{tpu_custom_call.1} parent=59 // pred_fallthru
          _
        // Predicated region
        $region93: #{tpu_custom_call.1} parent=59 // pred_check
          %p1895 = pneg %p322
        $region94: #{tpu_custom_call.1} parent=59 // pred_check_branch
          %1897 = sbr.rel (%p1895) target = $region96
        $region95: #{tpu_custom_call.1} parent=59 // pred_region
          %s1899 = ssub.s32 256, 256
          %1900 = vsyncadd [#allocation5], %s1899
          %s1901 = smul.addr %s36, 2
          %s1902 = smul.addr %s1901, 128
          %s1903 = scalar_lea.hbm %s10, %s1902
          %s1905 = sshll.u32 [#allocation14], 4
          %s1906 = int_to_ptr.vmem [resolvable:$true] %s1905
          %1908 = dma.vmem_to_hbm [thread:$0]  %s1906, 256, %s1903, [#allocation5]
        $region96: #{tpu_custom_call.1} parent=59 // pred_fallthru
          _
        // Predicated region
        $region97: #{tpu_custom_call.1} parent=59 // pred_check
          %p1909 = pneg %p322
        $region98: #{tpu_custom_call.1} parent=59 // pred_check_branch
          %1911 = sbr.rel (%p1909) target = $region100
        $region99: #{tpu_custom_call.1} parent=59 // pred_region
          %1912 = dma.done [#allocation5], 256
        $region100: #{tpu_custom_call.1} parent=59 // pred_fallthru
          _
      $region60: #{tpu_custom_call.1} parent=5 // pred_fallthru
        _
      %p1913 = scmp.le.s32.totalorder 2, %s27
      // Predicated region
      $region101: #{tpu_custom_call.1} parent=5 // pred_check
        %p1914 = pneg %p1913
      $region102: #{tpu_custom_call.1} parent=5 // pred_check_branch
        %1916 = sbr.rel (%p1914) target = $region104
      $region103: #{tpu_custom_call.1} parent=5 // pred_region
        %s1917 = ssub.s32 %s27, 2
      $region104: #{tpu_custom_call.1} parent=5 // pred_fallthru
        _
    $region6: #{tpu_custom_call.1} parent=1 // loop_footer
      %s31 = sadd.s32 1, %s27
    $region7: #{tpu_custom_call.1} parent=1 // loop_footer_branch
      %26 = sbr.rel target = $region3
    $region8: #{tpu_custom_call.1} parent=1 // loop_exit
      _
    %1918 = vsyncpa [#allocation4], 1
    %s1919 = scalar_lea.sflag [#allocation4], 1
    %1920 = vsyncpa %s1919, 1
    %1921 = vsyncpa [#allocation7], 1
    %s1922 = scalar_lea.sflag [#allocation7], 1
    %1923 = vsyncpa %s1922, 1
    %1924 = vsyncpa [#allocation10], 1
    %s1925 = scalar_lea.sflag [#allocation10], 1
    %1926 = vsyncpa %s1925, 1
    %1927 = vsyncpa [#allocation13], 1
    %s1928 = scalar_lea.sflag [#allocation13], 1
    %1929 = vsyncpa %s1928, 1
    %1930 = vsyncpa [#allocation5], 1
    %s1931 = scalar_lea.sflag [#allocation5], 1
    %1932 = vsyncpa %s1931, 1

</llo_original>
